<compile_context>
chip_gen: v7x
topology: tpu7x:2x2x1
jax: 0.10.0
libtpu: 0.0.40
codegen_flags: <defaults>
</compile_context>

<pallas_src>
import jax
import jax.numpy as jnp
from jax.experimental import pallas as pl
from jax.experimental.pallas import tpu as pltpu

# ---------------- model dimensions (small but layout-consistent) -------------
B = 2                       # batch
C = 3                       # image channels
IMG_HW = 32                 # image spatial size
PATCH = 16                  # ViT patch size
S_IMG = (IMG_HW // PATCH) ** 2          # 4 patches per image
D_IMG = C * PATCH * PATCH               # 768  (flattened patch)
AUDIO_LEN = 4096            # raw audio samples
FRAME = 256                 # wav2vec2-style frame width
S_AUD = AUDIO_LEN // FRAME              # 16 frames
D_AUD = FRAME                           # 256
H = 768                     # hidden width of both encoders and of fc output


# ------------------------------- Pallas kernel -------------------------------
def fused_kernel(img_ref, aud_ref, w_img_ref, w_aud_ref, b_ref, out_ref):
    """Single grid step: whole batch sits on the matmul M dimension."""
    # Pool before the matmuls (exact because the stand-in encoders are linear:
    # mean(X @ W + b, axis=seq) == mean(X, axis=seq) @ W + b).
    img_feat = jnp.mean(img_ref[...], axis=1)             # [B, D_IMG]
    aud_feat = jnp.mean(aud_ref[...], axis=1)             # [B, D_AUD]

    # encoder-linear -> mean-pool -> cat(dim=1) -> Linear(2H, H), with the two
    # back-to-back linears pre-fused offline:  out = f_img @ Wi + f_aud @ Wa + b
    out_ref[...] = (
        jnp.dot(img_feat, w_img_ref[...], preferred_element_type=jnp.float32)
        + jnp.dot(aud_feat, w_aud_ref[...], preferred_element_type=jnp.float32)
        + b_ref[...])                                      # [B, H]


def master_model_forward(img_patches, aud_frames, fused_params):
    w_img_f, w_aud_f, b_f = fused_params
    flops = 2 * B * (D_IMG * H + D_AUD * H) + B * (S_IMG * D_IMG + S_AUD * D_AUD)
    bytes_accessed = 4 * (img_patches.size + aud_frames.size
                          + w_img_f.size + w_aud_f.size + b_f.size + B * H)
    out = pl.pallas_call(
        fused_kernel,
        out_shape=jax.ShapeDtypeStruct((B, H), jnp.float32),
        grid=(1,),
        in_specs=[
            pl.BlockSpec((B, S_IMG, D_IMG), lambda i: (0, 0, 0)),
            pl.BlockSpec((B, S_AUD, D_AUD), lambda i: (0, 0, 0)),
            pl.BlockSpec((D_IMG, H), lambda i: (0, 0)),
            pl.BlockSpec((D_AUD, H), lambda i: (0, 0)),
            pl.BlockSpec((1, H), lambda i: (0, 0)),
        ],
        out_specs=pl.BlockSpec((B, H), lambda i: (0, 0)),
        compiler_params=pltpu.CompilerParams(
            dimension_semantics=("arbitrary",),
            vmem_limit_bytes=32 * 1024 * 1024,   # fits v7x's 64 MiB physical VMEM
        ),
        cost_estimate=pl.CostEstimate(
            flops=flops, transcendentals=0, bytes_accessed=bytes_accessed),
    )(img_patches, aud_frames, w_img_f, w_aud_f, b_f)
    return out                                             # [B, H]


# ------------------------------ glue (plain JAX) ------------------------------
def patchify(image):
    """NCHW image -> [B, S_IMG, C*P*P] flattened patches (channel, ph, pw)."""
    b, c, h, w = image.shape
    gh, gw = h // PATCH, w // PATCH
    x = image.reshape(b, c, gh, PATCH, gw, PATCH)
    x = jnp.transpose(x, (0, 2, 4, 1, 3, 5))          # [B, gh, gw, C, P, P]
    return x.reshape(b, gh * gw, c * PATCH * PATCH)


def frame_audio(audio):
    """Raw audio [B, T] -> [B, S_AUD, FRAME]."""
    return audio.reshape(audio.shape[0], S_AUD, FRAME)


def make_params(key):
    ks = jax.random.split(key, 7)
    scale = 0.02
    w_img = scale * jax.random.normal(ks[0], (D_IMG, H), jnp.float32)
    b_img = scale * jax.random.normal(ks[1], (1, H), jnp.float32)
    w_aud = scale * jax.random.normal(ks[2], (D_AUD, H), jnp.float32)
    b_aud = scale * jax.random.normal(ks[3], (1, H), jnp.float32)
    # nn.Linear(1536, 768): weight W is [768, 1536]; we store W.T split in two.
    w_fc_img = scale * jax.random.normal(ks[4], (H, H), jnp.float32)   # W.T[:768]
    w_fc_aud = scale * jax.random.normal(ks[5], (H, H), jnp.float32)   # W.T[768:]
    b_fc = scale * jax.random.normal(ks[6], (1, H), jnp.float32)
    return (w_img, b_img, w_aud, b_aud, w_fc_img, w_fc_aud, b_fc)


def fuse_params(params):
    """One-time offline fusion of encoder-linear with the fc split halves."""
    (w_img, b_img, w_aud, b_aud, w_fc_img, w_fc_aud, b_fc) = params
    w_img_fused = w_img @ w_fc_img                         # [D_IMG, H]
    w_aud_fused = w_aud @ w_fc_aud                         # [D_AUD, H]
    b_fused = b_img @ w_fc_img + b_aud @ w_fc_aud + b_fc   # [1, H]
    return (w_img_fused, w_aud_fused, b_fused)


def reference_forward(img_patches, aud_frames, params):
    """Unfused reference in the original module's op order."""
    (w_img, b_img, w_aud, b_aud, w_fc_img, w_fc_aud, b_fc) = params
    img_h = jnp.einsum("bsd,dh->bsh", img_patches, w_img) + b_img[None]
    aud_h = jnp.einsum("bsd,dh->bsh", aud_frames, w_aud) + b_aud[None]
    img_feat = img_h.mean(axis=1)
    aud_feat = aud_h.mean(axis=1)
    return img_feat @ w_fc_img + aud_feat @ w_fc_aud + b_fc


if __name__ == "__main__":
    key = jax.random.PRNGKey(0)
    k_img, k_aud, k_par = jax.random.split(key, 3)

    image = jax.random.normal(k_img, (B, C, IMG_HW, IMG_HW), jnp.float32)  # NCHW
    audio = jax.random.normal(k_aud, (B, AUDIO_LEN), jnp.float32)
    params = make_params(k_par)
    fused_params = fuse_params(params)     # done once, offline

    img_patches = patchify(image)      # [B, 4, 768]
    aud_frames = frame_audio(audio)    # [B, 16, 256]

    out = master_model_forward(img_patches, aud_frames, fused_params)
    out = jax.block_until_ready(out)

    ref = reference_forward(img_patches, aud_frames, params)
    assert out.shape == (B, H), out.shape
    assert jnp.allclose(out, ref, atol=1e-4, rtol=1e-4), \
        float(jnp.max(jnp.abs(out - ref)))

    print("KERNEL_OK")
</pallas_src>

<mosaic_0001>
module attributes {stable_mosaic.version = 11 : i64} {
  func.func @fused_kernel(%arg0: i32, %arg1: memref<2x4x768xf32, #tpu.memory_space<vmem>>, %arg2: memref<2x16x256xf32, #tpu.memory_space<vmem>>, %arg3: memref<768x768xf32, #tpu.memory_space<vmem>>, %arg4: memref<256x768xf32, #tpu.memory_space<vmem>>, %arg5: memref<1x768xf32, #tpu.memory_space<vmem>>, %arg6: memref<2x768xf32, #tpu.memory_space<vmem>>) attributes {dimension_semantics = [#tpu.dimension_semantics<arbitrary>], iteration_bounds = array<i64: 1>, scalar_prefetch = 0 : i64, scratch_operands = 0 : i64, tpu.core_type = #tpu.core_type<tc>, window_params = [{pipeline_mode = #tpu.pipeline_mode<synchronous>, transform_indices = @transform_0, window_bounds = array<i64: 2, 4, 768>}, {pipeline_mode = #tpu.pipeline_mode<synchronous>, transform_indices = @transform_1, window_bounds = array<i64: 2, 16, 256>}, {pipeline_mode = #tpu.pipeline_mode<synchronous>, transform_indices = @transform_2, window_bounds = array<i64: 768, 768>}, {pipeline_mode = #tpu.pipeline_mode<synchronous>, transform_indices = @transform_3, window_bounds = array<i64: 256, 768>}, {pipeline_mode = #tpu.pipeline_mode<synchronous>, transform_indices = @transform_4, window_bounds = array<i64: 1, 768>}, {pipeline_mode = #tpu.pipeline_mode<synchronous>, transform_indices = @transform_5, window_bounds = array<i64: 2, 768>}]} {
    %c0 = arith.constant 0 : index
    %c0_0 = arith.constant 0 : index
    %c0_1 = arith.constant 0 : index
    %0 = vector.load %arg1[%c0, %c0_0, %c0_1] : memref<2x4x768xf32, #tpu.memory_space<vmem>>, vector<2x4x768xf32>
    %cst = arith.constant dense<0.000000e+00> : vector<2x768xf32>
    %1 = vector.multi_reduction <add>, %0, %cst [1] : vector<2x4x768xf32> to vector<2x768xf32>
    %cst_2 = arith.constant 4.000000e+00 : f32
    %2 = vector.broadcast %cst_2 : f32 to vector<2x768xf32>
    %3 = arith.divf %1, %2 : vector<2x768xf32>
    %c0_3 = arith.constant 0 : index
    %c0_4 = arith.constant 0 : index
    %c0_5 = arith.constant 0 : index
    %4 = vector.load %arg2[%c0_3, %c0_4, %c0_5] : memref<2x16x256xf32, #tpu.memory_space<vmem>>, vector<2x16x256xf32>
    %cst_6 = arith.constant dense<0.000000e+00> : vector<2x256xf32>
    %5 = vector.multi_reduction <add>, %4, %cst_6 [1] : vector<2x16x256xf32> to vector<2x256xf32>
    %cst_7 = arith.constant 1.600000e+01 : f32
    %6 = vector.broadcast %cst_7 : f32 to vector<2x256xf32>
    %7 = arith.divf %5, %6 : vector<2x256xf32>
    %c0_8 = arith.constant 0 : index
    %c0_9 = arith.constant 0 : index
    %8 = vector.load %arg3[%c0_8, %c0_9] : memref<768x768xf32, #tpu.memory_space<vmem>>, vector<768x768xf32>
    %cst_10 = arith.constant dense<0.000000e+00> : vector<2x768xf32>
    %9 = tpu.matmul %3, %8, %cst_10 {dimension_numbers = #tpu.dot_dimension_numbers<[1], [0], [0], [1], [0, 0, 1, 1], [], []>} : vector<2x768xf32>, vector<768x768xf32>, vector<2x768xf32> -> vector<2x768xf32>
    %c0_11 = arith.constant 0 : index
    %c0_12 = arith.constant 0 : index
    %10 = vector.load %arg4[%c0_11, %c0_12] : memref<256x768xf32, #tpu.memory_space<vmem>>, vector<256x768xf32>
    %cst_13 = arith.constant dense<0.000000e+00> : vector<2x768xf32>
    %11 = tpu.matmul %7, %10, %cst_13 {dimension_numbers = #tpu.dot_dimension_numbers<[1], [0], [0], [1], [0, 0, 1, 1], [], []>} : vector<2x256xf32>, vector<256x768xf32>, vector<2x768xf32> -> vector<2x768xf32>
    %12 = arith.addf %9, %11 : vector<2x768xf32>
    %c0_14 = arith.constant 0 : index
    %c0_15 = arith.constant 0 : index
    %13 = vector.load %arg5[%c0_14, %c0_15] : memref<1x768xf32, #tpu.memory_space<vmem>>, vector<1x768xf32>
    %14 = vector.broadcast %13 : vector<1x768xf32> to vector<2x768xf32>
    %15 = arith.addf %12, %14 : vector<2x768xf32>
    %c0_16 = arith.constant 0 : index
    %c0_17 = arith.constant 0 : index
    %16 = vector.load %arg6[%c0_16, %c0_17] : memref<2x768xf32, #tpu.memory_space<vmem>>, vector<2x768xf32>
    tpu.vector_store %arg6[%c0_16, %c0_17], %15 {strides = array<i32>} : memref<2x768xf32, #tpu.memory_space<vmem>>, vector<2x768xf32>,
    return
  }
  func.func @transform_0(%arg0: i32) -> (i32, i32, i32) {
    %c0_i32 = arith.constant 0 : i32
    %c0_i32_0 = arith.constant 0 : i32
    %c0_i32_1 = arith.constant 0 : i32
    %c0_i32_2 = arith.constant 0 : i32
    return %c0_i32, %c0_i32_0, %c0_i32_1 : i32, i32, i32
  }
  func.func @transform_1(%arg0: i32) -> (i32, i32, i32) {
    %c0_i32 = arith.constant 0 : i32
    %c0_i32_0 = arith.constant 0 : i32
    %c0_i32_1 = arith.constant 0 : i32
    %c0_i32_2 = arith.constant 0 : i32
    return %c0_i32, %c0_i32_0, %c0_i32_1 : i32, i32, i32
  }
  func.func @transform_2(%arg0: i32) -> (i32, i32) {
    %c0_i32 = arith.constant 0 : i32
    %c0_i32_0 = arith.constant 0 : i32
    %c0_i32_1 = arith.constant 0 : i32
    return %c0_i32, %c0_i32_0 : i32, i32
  }
  func.func @transform_3(%arg0: i32) -> (i32, i32) {
    %c0_i32 = arith.constant 0 : i32
    %c0_i32_0 = arith.constant 0 : i32
    %c0_i32_1 = arith.constant 0 : i32
    return %c0_i32, %c0_i32_0 : i32, i32
  }
  func.func @transform_4(%arg0: i32) -> (i32, i32) {
    %c0_i32 = arith.constant 0 : i32
    %c0_i32_0 = arith.constant 0 : i32
    %c0_i32_1 = arith.constant 0 : i32
    return %c0_i32, %c0_i32_0 : i32, i32
  }
  func.func @transform_5(%arg0: i32) -> (i32, i32) {
    %c0_i32 = arith.constant 0 : i32
    %c0_i32_0 = arith.constant 0 : i32
    %c0_i32_1 = arith.constant 0 : i32
    return %c0_i32, %c0_i32_0 : i32, i32
  }
}

</mosaic_0001>

<llo_original>
// kernel: tpu_custom_call.1
$region0: #{tpu_custom_call.1}
  #allocation0 [shape = 'u32[]', space=smem, size = 0x4, offset = 0x4, fixed_abs, tag = 'smem constant byte address 0x4 - core index']
  #allocation1 [shape = 'u32[144,128]{1,0:T(1,128)}', space=vmem, size = 0x12000, scoped, tag = 'internal scratch']
  %s0 = inlined_call_operand.hbm [shape: f32[2,4,768], index: 0, kind: input, shape index: {}]
  %s1 = inlined_call_operand.hbm [shape: f32[2,16,256], index: 1, kind: input, shape index: {}]
  %s2 = inlined_call_operand.hbm [shape: f32[768,768], index: 2, kind: input, shape index: {}]
  %s3 = inlined_call_operand.hbm [shape: f32[256,768], index: 3, kind: input, shape index: {}]
  %s4 = inlined_call_operand.hbm [shape: f32[1,768], index: 4, kind: input, shape index: {}]
  %s5 = inlined_call_operand.hbm [shape: f32[2,768], index: 5, kind: output, shape index: {}]
  %s6 = sld [smem:[#allocation0]]
  $region50: #{tpu_custom_call.1} parent=0
    _
  %s8 = ssub.s32 1, %s6
  %s9 = scalar_select 0, %s8, %s6
  $region1: #{tpu_custom_call.1} parent=0
    #allocation2 [shape = 'u8[24576]{0}', space=vmem, size = 0x6000, scoped, tag = 'input window, operand 0, single buffered']
    #allocation3 [shape = 's32[1]{0}', space=sflag, size = 0x4, scoped, tag = 'scoped memory for tpu_custom_call.1']
    #allocation4 [shape = 's32[1]{0}', space=sflag, size = 0x4, scoped, tag = 'scoped memory for tpu_custom_call.1']
    #allocation5 [shape = 'u8[32768]{0}', space=vmem, size = 0x8000, scoped, tag = 'input window, operand 1, single buffered']
    #allocation6 [shape = 's32[1]{0}', space=sflag, size = 0x4, scoped, tag = 'scoped memory for tpu_custom_call.1']
    #allocation7 [shape = 'u8[2359296]{0}', space=vmem, size = 0x240000, scoped, tag = 'input window, operand 2, single buffered']
    #allocation8 [shape = 'u8[786432]{0}', space=vmem, size = 0xc0000, scoped, tag = 'input window, operand 3, single buffered']
    #allocation9 [shape = 's32[1]{0}', space=sflag, size = 0x4, scoped, tag = 'scoped memory for tpu_custom_call.1']
    #allocation10 [shape = 'u8[3072]{0}', space=vmem, size = 0xc00, scoped, tag = 'input window, operand 4, single buffered']
    #allocation11 [shape = 'u8[6144]{0}', space=vmem, size = 0x1800, scoped, tag = 'output window, operand 0, single buffered']
    %10 = vsyncpa [#allocation3], 0
    %11 = vsyncpa [#allocation6], 0
    %12 = vsyncpa [#allocation9], 0
    %13 = vsyncpa [#allocation4], 0
    // Predicated region
    $region2: #{tpu_custom_call.1} parent=1 // pred_check
      _
    $region3: #{tpu_custom_call.1} parent=1 // pred_check_branch
      %15 = sbr.rel (0) target = $region5
    $region4: #{tpu_custom_call.1} parent=1 // pred_region
      %s17 = ssub.s32 768, 768
      %18 = vsyncadd [#allocation3], %s17
      %s19 = sshll.u32 [#allocation2], 4
      %s20 = int_to_ptr.vmem [resolvable:$true] %s19
      %25 = dma.hbm_to_vmem [thread:$0]  %s0, 768, %s20, [#allocation3], 384, 384, 24
    $region5: #{tpu_custom_call.1} parent=1 // pred_fallthru
      _
    // Predicated region
    $region6: #{tpu_custom_call.1} parent=1 // pred_check
      _
    $region7: #{tpu_custom_call.1} parent=1 // pred_check_branch
      %27 = sbr.rel (0) target = $region9
    $region8: #{tpu_custom_call.1} parent=1 // pred_region
      %s29 = ssub.s32 1024, 1024
      %30 = vsyncadd [#allocation6], %s29
      %s31 = sshll.u32 [#allocation5], 4
      %s32 = int_to_ptr.vmem [resolvable:$true] %s31
      %37 = dma.hbm_to_vmem [thread:$0]  %s1, 1024, %s32, [#allocation6], 256, 256, 16
    $region9: #{tpu_custom_call.1} parent=1 // pred_fallthru
      _
    // Predicated region
    $region10: #{tpu_custom_call.1} parent=1 // pred_check
      _
    $region11: #{tpu_custom_call.1} parent=1 // pred_check_branch
      %39 = sbr.rel (0) target = $region13
    $region12: #{tpu_custom_call.1} parent=1 // pred_region
      %s41 = ssub.s32 73728, 73728
      %42 = vsyncadd [#allocation6], %s41
      %s43 = sshll.u32 [#allocation7], 4
      %s44 = int_to_ptr.vmem [resolvable:$true] %s43
      %49 = dma.hbm_to_vmem [thread:$0]  %s2, 73728, %s44, [#allocation6], 768, 768, 48
    $region13: #{tpu_custom_call.1} parent=1 // pred_fallthru
      _
    // Predicated region
    $region14: #{tpu_custom_call.1} parent=1 // pred_check
      _
    $region15: #{tpu_custom_call.1} parent=1 // pred_check_branch
      %51 = sbr.rel (0) target = $region17
    $region16: #{tpu_custom_call.1} parent=1 // pred_region
      %s53 = ssub.s32 24576, 24576
      %54 = vsyncadd [#allocation9], %s53
      %s55 = sshll.u32 [#allocation8], 4
      %s56 = int_to_ptr.vmem [resolvable:$true] %s55
      %61 = dma.hbm_to_vmem [thread:$0]  %s3, 24576, %s56, [#allocation9], 768, 768, 48
    $region17: #{tpu_custom_call.1} parent=1 // pred_fallthru
      _
    // Predicated region
    $region18: #{tpu_custom_call.1} parent=1 // pred_check
      _
    $region19: #{tpu_custom_call.1} parent=1 // pred_check_branch
      %63 = sbr.rel (0) target = $region21
    $region20: #{tpu_custom_call.1} parent=1 // pred_region
      %s65 = ssub.s32 96, 96
      %66 = vsyncadd [#allocation9], %s65
      %s68 = sshll.u32 [#allocation10], 4
      %s69 = int_to_ptr.vmem [resolvable:$true] %s68
      %71 = dma.hbm_to_vmem [thread:$0]  %s4, 96, %s69, [#allocation9]
    $region21: #{tpu_custom_call.1} parent=1 // pred_fallthru
      _
    // Predicated region
    $region22: #{tpu_custom_call.1} parent=1 // pred_check
      _
    $region23: #{tpu_custom_call.1} parent=1 // pred_check_branch
      %73 = sbr.rel (0) target = $region25
    $region24: #{tpu_custom_call.1} parent=1 // pred_region
      %74 = dma.done [#allocation3], 768
    $region25: #{tpu_custom_call.1} parent=1 // pred_fallthru
      _
    // Predicated region
    $region26: #{tpu_custom_call.1} parent=1 // pred_check
      _
    $region27: #{tpu_custom_call.1} parent=1 // pred_check_branch
      %76 = sbr.rel (0) target = $region29
    $region28: #{tpu_custom_call.1} parent=1 // pred_region
      %77 = dma.done [#allocation6], 1024
    $region29: #{tpu_custom_call.1} parent=1 // pred_fallthru
      _
    // Predicated region
    $region30: #{tpu_custom_call.1} parent=1 // pred_check
      _
    $region31: #{tpu_custom_call.1} parent=1 // pred_check_branch
      %79 = sbr.rel (0) target = $region33
    $region32: #{tpu_custom_call.1} parent=1 // pred_region
      %80 = dma.done [#allocation6], 73728
    $region33: #{tpu_custom_call.1} parent=1 // pred_fallthru
      _
    // Predicated region
    $region34: #{tpu_custom_call.1} parent=1 // pred_check
      _
    $region35: #{tpu_custom_call.1} parent=1 // pred_check_branch
      %82 = sbr.rel (0) target = $region37
    $region36: #{tpu_custom_call.1} parent=1 // pred_region
      %83 = dma.done [#allocation9], 24576
    $region37: #{tpu_custom_call.1} parent=1 // pred_fallthru
      _
    // Predicated region
    $region38: #{tpu_custom_call.1} parent=1 // pred_check
      _
    $region39: #{tpu_custom_call.1} parent=1 // pred_check_branch
      %85 = sbr.rel (0) target = $region41
    $region40: #{tpu_custom_call.1} parent=1 // pred_region
      %86 = dma.done [#allocation9], 96
    $region41: #{tpu_custom_call.1} parent=1 // pred_fallthru
      _
    %v87 = vld [vmem:[#allocation2] sm:$0xff]
    %v88 = vld [vmem:[#allocation2 + $0x8] sm:$0xff]
    %v89 = vld [vmem:[#allocation2 + $0x10] sm:$0xff]
    %v90 = vld [vmem:[#allocation2 + $0x18] sm:$0xff]
    %v91 = vld [vmem:[#allocation2 + $0x20] sm:$0xff]
    %v92 = vld [vmem:[#allocation2 + $0x28] sm:$0xff]
    %v99 = vcombine.high %v87, %v87
    %v100 = vcombine.high %v88, %v88
    %v101 = vcombine.high %v89, %v89
    %v102 = vcombine.high %v90, %v90
    %v103 = vcombine.high %v91, %v91
    %v104 = vcombine.high %v92, %v92
    %vm111 = vcmask 1043456
    %v112 = vsel %vm111, %v87, 0.0
    %v113 = vrot.slane %v112, 4
    %v114 = vadd.f32 %v112, %v113
    %v115 = vrot.slane %v114, 2
    %v116 = vadd.f32 %v114, %v115
    %v117 = vrot.slane %v116, 1
    %v118 = vadd.f32 %v116, %v117
    %v119 = vsel %vm111, %v99, 0.0
    %v120 = vrot.slane %v119, 4
    %v121 = vadd.f32 %v119, %v120
    %v122 = vrot.slane %v121, 2
    %v123 = vadd.f32 %v121, %v122
    %v124 = vrot.slane %v123, 1
    %v125 = vadd.f32 %v123, %v124
    %v126 = vsel %vm111, %v88, 0.0
    %v127 = vrot.slane %v126, 4
    %v128 = vadd.f32 %v126, %v127
    %v129 = vrot.slane %v128, 2
    %v130 = vadd.f32 %v128, %v129
    %v131 = vrot.slane %v130, 1
    %v132 = vadd.f32 %v130, %v131
    %v133 = vsel %vm111, %v100, 0.0
    %v134 = vrot.slane %v133, 4
    %v135 = vadd.f32 %v133, %v134
    %v136 = vrot.slane %v135, 2
    %v137 = vadd.f32 %v135, %v136
    %v138 = vrot.slane %v137, 1
    %v139 = vadd.f32 %v137, %v138
    %v140 = vsel %vm111, %v89, 0.0
    %v141 = vrot.slane %v140, 4
    %v142 = vadd.f32 %v140, %v141
    %v143 = vrot.slane %v142, 2
    %v144 = vadd.f32 %v142, %v143
    %v145 = vrot.slane %v144, 1
    %v146 = vadd.f32 %v144, %v145
    %v147 = vsel %vm111, %v101, 0.0
    %v148 = vrot.slane %v147, 4
    %v149 = vadd.f32 %v147, %v148
    %v150 = vrot.slane %v149, 2
    %v151 = vadd.f32 %v149, %v150
    %v152 = vrot.slane %v151, 1
    %v153 = vadd.f32 %v151, %v152
    %v154 = vsel %vm111, %v90, 0.0
    %v155 = vrot.slane %v154, 4
    %v156 = vadd.f32 %v154, %v155
    %v157 = vrot.slane %v156, 2
    %v158 = vadd.f32 %v156, %v157
    %v159 = vrot.slane %v158, 1
    %v160 = vadd.f32 %v158, %v159
    %v161 = vsel %vm111, %v102, 0.0
    %v162 = vrot.slane %v161, 4
    %v163 = vadd.f32 %v161, %v162
    %v164 = vrot.slane %v163, 2
    %v165 = vadd.f32 %v163, %v164
    %v166 = vrot.slane %v165, 1
    %v167 = vadd.f32 %v165, %v166
    %v168 = vsel %vm111, %v91, 0.0
    %v169 = vrot.slane %v168, 4
    %v170 = vadd.f32 %v168, %v169
    %v171 = vrot.slane %v170, 2
    %v172 = vadd.f32 %v170, %v171
    %v173 = vrot.slane %v172, 1
    %v174 = vadd.f32 %v172, %v173
    %v175 = vsel %vm111, %v103, 0.0
    %v176 = vrot.slane %v175, 4
    %v177 = vadd.f32 %v175, %v176
    %v178 = vrot.slane %v177, 2
    %v179 = vadd.f32 %v177, %v178
    %v180 = vrot.slane %v179, 1
    %v181 = vadd.f32 %v179, %v180
    %v182 = vsel %vm111, %v92, 0.0
    %v183 = vrot.slane %v182, 4
    %v184 = vadd.f32 %v182, %v183
    %v185 = vrot.slane %v184, 2
    %v186 = vadd.f32 %v184, %v185
    %v187 = vrot.slane %v186, 1
    %v188 = vadd.f32 %v186, %v187
    %v189 = vsel %vm111, %v104, 0.0
    %v190 = vrot.slane %v189, 4
    %v191 = vadd.f32 %v189, %v190
    %v192 = vrot.slane %v191, 2
    %v193 = vadd.f32 %v191, %v192
    %v194 = vrot.slane %v193, 1
    %v195 = vadd.f32 %v193, %v194
    %v196 = vrcp.pop 4.0
    %v197 = vmul.f32 %v118, %v196
    %v198 = vmul.f32 %v125, %v196
    %v199 = vmul.f32 %v132, %v196
    %v200 = vmul.f32 %v139, %v196
    %v201 = vmul.f32 %v146, %v196
    %v202 = vmul.f32 %v153, %v196
    %v203 = vmul.f32 %v160, %v196
    %v204 = vmul.f32 %v167, %v196
    %v205 = vmul.f32 %v174, %v196
    %v206 = vmul.f32 %v181, %v196
    %v207 = vmul.f32 %v188, %v196
    %v208 = vmul.f32 %v195, %v196
    %v209 = vld [vmem:[#allocation5] sm:$0xff]
    %v210 = vld [vmem:[#allocation5 + $0x8] sm:$0xff]
    %v211 = vld [vmem:[#allocation5 + $0x10] sm:$0xff]
    %v212 = vld [vmem:[#allocation5 + $0x18] sm:$0xff]
    %v213 = vld [vmem:[#allocation5 + $0x20] sm:$0xff]
    %v214 = vld [vmem:[#allocation5 + $0x28] sm:$0xff]
    %v215 = vld [vmem:[#allocation5 + $0x30] sm:$0xff]
    %v216 = vld [vmem:[#allocation5 + $0x38] sm:$0xff]
    %v217 = vadd.f32 %v209, %v211
    %v218 = vrot.slane %v217, 4
    %v219 = vadd.f32 %v217, %v218
    %v220 = vrot.slane %v219, 2
    %v221 = vadd.f32 %v219, %v220
    %v222 = vrot.slane %v221, 1
    %v223 = vadd.f32 %v221, %v222
    %v224 = vadd.f32 %v210, %v212
    %v225 = vrot.slane %v224, 4
    %v226 = vadd.f32 %v224, %v225
    %v227 = vrot.slane %v226, 2
    %v228 = vadd.f32 %v226, %v227
    %v229 = vrot.slane %v228, 1
    %v230 = vadd.f32 %v228, %v229
    %v231 = vadd.f32 %v213, %v215
    %v232 = vrot.slane %v231, 4
    %v233 = vadd.f32 %v231, %v232
    %v234 = vrot.slane %v233, 2
    %v235 = vadd.f32 %v233, %v234
    %v236 = vrot.slane %v235, 1
    %v237 = vadd.f32 %v235, %v236
    %v238 = vadd.f32 %v214, %v216
    %v239 = vrot.slane %v238, 4
    %v240 = vadd.f32 %v238, %v239
    %v241 = vrot.slane %v240, 2
    %v242 = vadd.f32 %v240, %v241
    %v243 = vrot.slane %v242, 1
    %v244 = vadd.f32 %v242, %v243
    %v245 = vrcp.pop 16.0
    %v246 = vmul.f32 %v223, %v245
    %v247 = vmul.f32 %v230, %v245
    %v248 = vmul.f32 %v237, %v245
    %v249 = vmul.f32 %v244, %v245
    %v250 = vld [vmem:[#allocation7] sm:$0xff]
    %v251 = vld [vmem:[#allocation7 + $0x8] sm:$0xff]
    %v252 = vld [vmem:[#allocation7 + $0x10] sm:$0xff]
    %v253 = vld [vmem:[#allocation7 + $0x18] sm:$0xff]
    %v254 = vld [vmem:[#allocation7 + $0x20] sm:$0xff]
    %v255 = vld [vmem:[#allocation7 + $0x28] sm:$0xff]
    %v256 = vld [vmem:[#allocation7 + $0x30] sm:$0xff]
    %v257 = vld [vmem:[#allocation7 + $0x38] sm:$0xff]
    %v258 = vld [vmem:[#allocation7 + $0x40] sm:$0xff]
    %v259 = vld [vmem:[#allocation7 + $0x48] sm:$0xff]
    %v260 = vld [vmem:[#allocation7 + $0x50] sm:$0xff]
    %v261 = vld [vmem:[#allocation7 + $0x58] sm:$0xff]
    %v262 = vld [vmem:[#allocation7 + $0x60] sm:$0xff]
    %v263 = vld [vmem:[#allocation7 + $0x68] sm:$0xff]
    %v264 = vld [vmem:[#allocation7 + $0x70] sm:$0xff]
    %v265 = vld [vmem:[#allocation7 + $0x78] sm:$0xff]
    %v266 = vld [vmem:[#allocation7 + $0x80] sm:$0xff]
    %v267 = vld [vmem:[#allocation7 + $0x88] sm:$0xff]
    %v268 = vld [vmem:[#allocation7 + $0x90] sm:$0xff]
    %v269 = vld [vmem:[#allocation7 + $0x98] sm:$0xff]
    %v270 = vld [vmem:[#allocation7 + $0xa0] sm:$0xff]
    %v271 = vld [vmem:[#allocation7 + $0xa8] sm:$0xff]
    %v272 = vld [vmem:[#allocation7 + $0xb0] sm:$0xff]
    %v273 = vld [vmem:[#allocation7 + $0xb8] sm:$0xff]
    %v274 = vld [vmem:[#allocation7 + $0xc0] sm:$0xff]
    %v275 = vld [vmem:[#allocation7 + $0xc8] sm:$0xff]
    %v276 = vld [vmem:[#allocation7 + $0xd0] sm:$0xff]
    %v277 = vld [vmem:[#allocation7 + $0xd8] sm:$0xff]
    %v278 = vld [vmem:[#allocation7 + $0xe0] sm:$0xff]
    %v279 = vld [vmem:[#allocation7 + $0xe8] sm:$0xff]
    %v280 = vld [vmem:[#allocation7 + $0xf0] sm:$0xff]
    %v281 = vld [vmem:[#allocation7 + $0xf8] sm:$0xff]
    %v282 = vld [vmem:[#allocation7 + $0x100] sm:$0xff]
    %v283 = vld [vmem:[#allocation7 + $0x108] sm:$0xff]
    %v284 = vld [vmem:[#allocation7 + $0x110] sm:$0xff]
    %v285 = vld [vmem:[#allocation7 + $0x118] sm:$0xff]
    %v286 = vld [vmem:[#allocation7 + $0x120] sm:$0xff]
    %v287 = vld [vmem:[#allocation7 + $0x128] sm:$0xff]
    %v288 = vld [vmem:[#allocation7 + $0x130] sm:$0xff]
    %v289 = vld [vmem:[#allocation7 + $0x138] sm:$0xff]
    %v290 = vld [vmem:[#allocation7 + $0x140] sm:$0xff]
    %v291 = vld [vmem:[#allocation7 + $0x148] sm:$0xff]
    %v292 = vld [vmem:[#allocation7 + $0x150] sm:$0xff]
    %v293 = vld [vmem:[#allocation7 + $0x158] sm:$0xff]
    %v294 = vld [vmem:[#allocation7 + $0x160] sm:$0xff]
    %v295 = vld [vmem:[#allocation7 + $0x168] sm:$0xff]
    %v296 = vld [vmem:[#allocation7 + $0x170] sm:$0xff]
    %v297 = vld [vmem:[#allocation7 + $0x178] sm:$0xff]
    %v298 = vld [vmem:[#allocation7 + $0x180] sm:$0xff]
    %v299 = vld [vmem:[#allocation7 + $0x188] sm:$0xff]
    %v300 = vld [vmem:[#allocation7 + $0x190] sm:$0xff]
    %v301 = vld [vmem:[#allocation7 + $0x198] sm:$0xff]
    %v302 = vld [vmem:[#allocation7 + $0x1a0] sm:$0xff]
    %v303 = vld [vmem:[#allocation7 + $0x1a8] sm:$0xff]
    %v304 = vld [vmem:[#allocation7 + $0x1b0] sm:$0xff]
    %v305 = vld [vmem:[#allocation7 + $0x1b8] sm:$0xff]
    %v306 = vld [vmem:[#allocation7 + $0x1c0] sm:$0xff]
    %v307 = vld [vmem:[#allocation7 + $0x1c8] sm:$0xff]
    %v308 = vld [vmem:[#allocation7 + $0x1d0] sm:$0xff]
    %v309 = vld [vmem:[#allocation7 + $0x1d8] sm:$0xff]
    %v310 = vld [vmem:[#allocation7 + $0x1e0] sm:$0xff]
    %v311 = vld [vmem:[#allocation7 + $0x1e8] sm:$0xff]
    %v312 = vld [vmem:[#allocation7 + $0x1f0] sm:$0xff]
    %v313 = vld [vmem:[#allocation7 + $0x1f8] sm:$0xff]
    %v314 = vld [vmem:[#allocation7 + $0x200] sm:$0xff]
    %v315 = vld [vmem:[#allocation7 + $0x208] sm:$0xff]
    %v316 = vld [vmem:[#allocation7 + $0x210] sm:$0xff]
    %v317 = vld [vmem:[#allocation7 + $0x218] sm:$0xff]
    %v318 = vld [vmem:[#allocation7 + $0x220] sm:$0xff]
    %v319 = vld [vmem:[#allocation7 + $0x228] sm:$0xff]
    %v320 = vld [vmem:[#allocation7 + $0x230] sm:$0xff]
    %v321 = vld [vmem:[#allocation7 + $0x238] sm:$0xff]
    %v322 = vld [vmem:[#allocation7 + $0x240] sm:$0xff]
    %v323 = vld [vmem:[#allocation7 + $0x248] sm:$0xff]
    %v324 = vld [vmem:[#allocation7 + $0x250] sm:$0xff]
    %v325 = vld [vmem:[#allocation7 + $0x258] sm:$0xff]
    %v326 = vld [vmem:[#allocation7 + $0x260] sm:$0xff]
    %v327 = vld [vmem:[#allocation7 + $0x268] sm:$0xff]
    %v328 = vld [vmem:[#allocation7 + $0x270] sm:$0xff]
    %v329 = vld [vmem:[#allocation7 + $0x278] sm:$0xff]
    %v330 = vld [vmem:[#allocation7 + $0x280] sm:$0xff]
    %v331 = vld [vmem:[#allocation7 + $0x288] sm:$0xff]
    %v332 = vld [vmem:[#allocation7 + $0x290] sm:$0xff]
    %v333 = vld [vmem:[#allocation7 + $0x298] sm:$0xff]
    %v334 = vld [vmem:[#allocation7 + $0x2a0] sm:$0xff]
    %v335 = vld [vmem:[#allocation7 + $0x2a8] sm:$0xff]
    %v336 = vld [vmem:[#allocation7 + $0x2b0] sm:$0xff]
    %v337 = vld [vmem:[#allocation7 + $0x2b8] sm:$0xff]
    %v338 = vld [vmem:[#allocation7 + $0x2c0] sm:$0xff]
    %v339 = vld [vmem:[#allocation7 + $0x2c8] sm:$0xff]
    %v340 = vld [vmem:[#allocation7 + $0x2d0] sm:$0xff]
    %v341 = vld [vmem:[#allocation7 + $0x2d8] sm:$0xff]
    %v342 = vld [vmem:[#allocation7 + $0x2e0] sm:$0xff]
    %v343 = vld [vmem:[#allocation7 + $0x2e8] sm:$0xff]
    %v344 = vld [vmem:[#allocation7 + $0x2f0] sm:$0xff]
    %v345 = vld [vmem:[#allocation7 + $0x2f8] sm:$0xff]
    %v346 = vld [vmem:[#allocation7 + $0x300] sm:$0xff]
    %v347 = vld [vmem:[#allocation7 + $0x308] sm:$0xff]
    %v348 = vld [vmem:[#allocation7 + $0x310] sm:$0xff]
    %v349 = vld [vmem:[#allocation7 + $0x318] sm:$0xff]
    %v350 = vld [vmem:[#allocation7 + $0x320] sm:$0xff]
    %v351 = vld [vmem:[#allocation7 + $0x328] sm:$0xff]
    %v352 = vld [vmem:[#allocation7 + $0x330] sm:$0xff]
    %v353 = vld [vmem:[#allocation7 + $0x338] sm:$0xff]
    %v354 = vld [vmem:[#allocation7 + $0x340] sm:$0xff]
    %v355 = vld [vmem:[#allocation7 + $0x348] sm:$0xff]
    %v356 = vld [vmem:[#allocation7 + $0x350] sm:$0xff]
    %v357 = vld [vmem:[#allocation7 + $0x358] sm:$0xff]
    %v358 = vld [vmem:[#allocation7 + $0x360] sm:$0xff]
    %v359 = vld [vmem:[#allocation7 + $0x368] sm:$0xff]
    %v360 = vld [vmem:[#allocation7 + $0x370] sm:$0xff]
    %v361 = vld [vmem:[#allocation7 + $0x378] sm:$0xff]
    %v362 = vld [vmem:[#allocation7 + $0x380] sm:$0xff]
    %v363 = vld [vmem:[#allocation7 + $0x388] sm:$0xff]
    %v364 = vld [vmem:[#allocation7 + $0x390] sm:$0xff]
    %v365 = vld [vmem:[#allocation7 + $0x398] sm:$0xff]
    %v366 = vld [vmem:[#allocation7 + $0x3a0] sm:$0xff]
    %v367 = vld [vmem:[#allocation7 + $0x3a8] sm:$0xff]
    %v368 = vld [vmem:[#allocation7 + $0x3b0] sm:$0xff]
    %v369 = vld [vmem:[#allocation7 + $0x3b8] sm:$0xff]
    %v370 = vld [vmem:[#allocation7 + $0x3c0] sm:$0xff]
    %v371 = vld [vmem:[#allocation7 + $0x3c8] sm:$0xff]
    %v372 = vld [vmem:[#allocation7 + $0x3d0] sm:$0xff]
    %v373 = vld [vmem:[#allocation7 + $0x3d8] sm:$0xff]
    %v374 = vld [vmem:[#allocation7 + $0x3e0] sm:$0xff]
    %v375 = vld [vmem:[#allocation7 + $0x3e8] sm:$0xff]
    %v376 = vld [vmem:[#allocation7 + $0x3f0] sm:$0xff]
    %v377 = vld [vmem:[#allocation7 + $0x3f8] sm:$0xff]
    %v378 = vld [vmem:[#allocation7 + $0x400] sm:$0xff]
    %v379 = vld [vmem:[#allocation7 + $0x408] sm:$0xff]
    %v380 = vld [vmem:[#allocation7 + $0x410] sm:$0xff]
    %v381 = vld [vmem:[#allocation7 + $0x418] sm:$0xff]
    %v382 = vld [vmem:[#allocation7 + $0x420] sm:$0xff]
    %v383 = vld [vmem:[#allocation7 + $0x428] sm:$0xff]
    %v384 = vld [vmem:[#allocation7 + $0x430] sm:$0xff]
    %v385 = vld [vmem:[#allocation7 + $0x438] sm:$0xff]
    %v386 = vld [vmem:[#allocation7 + $0x440] sm:$0xff]
    %v387 = vld [vmem:[#allocation7 + $0x448] sm:$0xff]
    %v388 = vld [vmem:[#allocation7 + $0x450] sm:$0xff]
    %v389 = vld [vmem:[#allocation7 + $0x458] sm:$0xff]
    %v390 = vld [vmem:[#allocation7 + $0x460] sm:$0xff]
    %v391 = vld [vmem:[#allocation7 + $0x468] sm:$0xff]
    %v392 = vld [vmem:[#allocation7 + $0x470] sm:$0xff]
    %v393 = vld [vmem:[#allocation7 + $0x478] sm:$0xff]
    %v394 = vld [vmem:[#allocation7 + $0x480] sm:$0xff]
    %v395 = vld [vmem:[#allocation7 + $0x488] sm:$0xff]
    %v396 = vld [vmem:[#allocation7 + $0x490] sm:$0xff]
    %v397 = vld [vmem:[#allocation7 + $0x498] sm:$0xff]
    %v398 = vld [vmem:[#allocation7 + $0x4a0] sm:$0xff]
    %v399 = vld [vmem:[#allocation7 + $0x4a8] sm:$0xff]
    %v400 = vld [vmem:[#allocation7 + $0x4b0] sm:$0xff]
    %v401 = vld [vmem:[#allocation7 + $0x4b8] sm:$0xff]
    %v402 = vld [vmem:[#allocation7 + $0x4c0] sm:$0xff]
    %v403 = vld [vmem:[#allocation7 + $0x4c8] sm:$0xff]
    %v404 = vld [vmem:[#allocation7 + $0x4d0] sm:$0xff]
    %v405 = vld [vmem:[#allocation7 + $0x4d8] sm:$0xff]
    %v406 = vld [vmem:[#allocation7 + $0x4e0] sm:$0xff]
    %v407 = vld [vmem:[#allocation7 + $0x4e8] sm:$0xff]
    %v408 = vld [vmem:[#allocation7 + $0x4f0] sm:$0xff]
    %v409 = vld [vmem:[#allocation7 + $0x4f8] sm:$0xff]
    %v410 = vld [vmem:[#allocation7 + $0x500] sm:$0xff]
    %v411 = vld [vmem:[#allocation7 + $0x508] sm:$0xff]
    %v412 = vld [vmem:[#allocation7 + $0x510] sm:$0xff]
    %v413 = vld [vmem:[#allocation7 + $0x518] sm:$0xff]
    %v414 = vld [vmem:[#allocation7 + $0x520] sm:$0xff]
    %v415 = vld [vmem:[#allocation7 + $0x528] sm:$0xff]
    %v416 = vld [vmem:[#allocation7 + $0x530] sm:$0xff]
    %v417 = vld [vmem:[#allocation7 + $0x538] sm:$0xff]
    %v418 = vld [vmem:[#allocation7 + $0x540] sm:$0xff]
    %v419 = vld [vmem:[#allocation7 + $0x548] sm:$0xff]
    %v420 = vld [vmem:[#allocation7 + $0x550] sm:$0xff]
    %v421 = vld [vmem:[#allocation7 + $0x558] sm:$0xff]
    %v422 = vld [vmem:[#allocation7 + $0x560] sm:$0xff]
    %v423 = vld [vmem:[#allocation7 + $0x568] sm:$0xff]
    %v424 = vld [vmem:[#allocation7 + $0x570] sm:$0xff]
    %v425 = vld [vmem:[#allocation7 + $0x578] sm:$0xff]
    %v426 = vld [vmem:[#allocation7 + $0x580] sm:$0xff]
    %v427 = vld [vmem:[#allocation7 + $0x588] sm:$0xff]
    %v428 = vld [vmem:[#allocation7 + $0x590] sm:$0xff]
    %v429 = vld [vmem:[#allocation7 + $0x598] sm:$0xff]
    %v430 = vld [vmem:[#allocation7 + $0x5a0] sm:$0xff]
    %v431 = vld [vmem:[#allocation7 + $0x5a8] sm:$0xff]
    %v432 = vld [vmem:[#allocation7 + $0x5b0] sm:$0xff]
    %v433 = vld [vmem:[#allocation7 + $0x5b8] sm:$0xff]
    %v434 = vld [vmem:[#allocation7 + $0x5c0] sm:$0xff]
    %v435 = vld [vmem:[#allocation7 + $0x5c8] sm:$0xff]
    %v436 = vld [vmem:[#allocation7 + $0x5d0] sm:$0xff]
    %v437 = vld [vmem:[#allocation7 + $0x5d8] sm:$0xff]
    %v438 = vld [vmem:[#allocation7 + $0x5e0] sm:$0xff]
    %v439 = vld [vmem:[#allocation7 + $0x5e8] sm:$0xff]
    %v440 = vld [vmem:[#allocation7 + $0x5f0] sm:$0xff]
    %v441 = vld [vmem:[#allocation7 + $0x5f8] sm:$0xff]
    %v442 = vld [vmem:[#allocation7 + $0x600] sm:$0xff]
    %v443 = vld [vmem:[#allocation7 + $0x608] sm:$0xff]
    %v444 = vld [vmem:[#allocation7 + $0x610] sm:$0xff]
    %v445 = vld [vmem:[#allocation7 + $0x618] sm:$0xff]
    %v446 = vld [vmem:[#allocation7 + $0x620] sm:$0xff]
    %v447 = vld [vmem:[#allocation7 + $0x628] sm:$0xff]
    %v448 = vld [vmem:[#allocation7 + $0x630] sm:$0xff]
    %v449 = vld [vmem:[#allocation7 + $0x638] sm:$0xff]
    %v450 = vld [vmem:[#allocation7 + $0x640] sm:$0xff]
    %v451 = vld [vmem:[#allocation7 + $0x648] sm:$0xff]
    %v452 = vld [vmem:[#allocation7 + $0x650] sm:$0xff]
    %v453 = vld [vmem:[#allocation7 + $0x658] sm:$0xff]
    %v454 = vld [vmem:[#allocation7 + $0x660] sm:$0xff]
    %v455 = vld [vmem:[#allocation7 + $0x668] sm:$0xff]
    %v456 = vld [vmem:[#allocation7 + $0x670] sm:$0xff]
    %v457 = vld [vmem:[#allocation7 + $0x678] sm:$0xff]
    %v458 = vld [vmem:[#allocation7 + $0x680] sm:$0xff]
    %v459 = vld [vmem:[#allocation7 + $0x688] sm:$0xff]
    %v460 = vld [vmem:[#allocation7 + $0x690] sm:$0xff]
    %v461 = vld [vmem:[#allocation7 + $0x698] sm:$0xff]
    %v462 = vld [vmem:[#allocation7 + $0x6a0] sm:$0xff]
    %v463 = vld [vmem:[#allocation7 + $0x6a8] sm:$0xff]
    %v464 = vld [vmem:[#allocation7 + $0x6b0] sm:$0xff]
    %v465 = vld [vmem:[#allocation7 + $0x6b8] sm:$0xff]
    %v466 = vld [vmem:[#allocation7 + $0x6c0] sm:$0xff]
    %v467 = vld [vmem:[#allocation7 + $0x6c8] sm:$0xff]
    %v468 = vld [vmem:[#allocation7 + $0x6d0] sm:$0xff]
    %v469 = vld [vmem:[#allocation7 + $0x6d8] sm:$0xff]
    %v470 = vld [vmem:[#allocation7 + $0x6e0] sm:$0xff]
    %v471 = vld [vmem:[#allocation7 + $0x6e8] sm:$0xff]
    %v472 = vld [vmem:[#allocation7 + $0x6f0] sm:$0xff]
    %v473 = vld [vmem:[#allocation7 + $0x6f8] sm:$0xff]
    %v474 = vld [vmem:[#allocation7 + $0x700] sm:$0xff]
    %v475 = vld [vmem:[#allocation7 + $0x708] sm:$0xff]
    %v476 = vld [vmem:[#allocation7 + $0x710] sm:$0xff]
    %v477 = vld [vmem:[#allocation7 + $0x718] sm:$0xff]
    %v478 = vld [vmem:[#allocation7 + $0x720] sm:$0xff]
    %v479 = vld [vmem:[#allocation7 + $0x728] sm:$0xff]
    %v480 = vld [vmem:[#allocation7 + $0x730] sm:$0xff]
    %v481 = vld [vmem:[#allocation7 + $0x738] sm:$0xff]
    %v482 = vld [vmem:[#allocation7 + $0x740] sm:$0xff]
    %v483 = vld [vmem:[#allocation7 + $0x748] sm:$0xff]
    %v484 = vld [vmem:[#allocation7 + $0x750] sm:$0xff]
    %v485 = vld [vmem:[#allocation7 + $0x758] sm:$0xff]
    %v486 = vld [vmem:[#allocation7 + $0x760] sm:$0xff]
    %v487 = vld [vmem:[#allocation7 + $0x768] sm:$0xff]
    %v488 = vld [vmem:[#allocation7 + $0x770] sm:$0xff]
    %v489 = vld [vmem:[#allocation7 + $0x778] sm:$0xff]
    %v490 = vld [vmem:[#allocation7 + $0x780] sm:$0xff]
    %v491 = vld [vmem:[#allocation7 + $0x788] sm:$0xff]
    %v492 = vld [vmem:[#allocation7 + $0x790] sm:$0xff]
    %v493 = vld [vmem:[#allocation7 + $0x798] sm:$0xff]
    %v494 = vld [vmem:[#allocation7 + $0x7a0] sm:$0xff]
    %v495 = vld [vmem:[#allocation7 + $0x7a8] sm:$0xff]
    %v496 = vld [vmem:[#allocation7 + $0x7b0] sm:$0xff]
    %v497 = vld [vmem:[#allocation7 + $0x7b8] sm:$0xff]
    %v498 = vld [vmem:[#allocation7 + $0x7c0] sm:$0xff]
    %v499 = vld [vmem:[#allocation7 + $0x7c8] sm:$0xff]
    %v500 = vld [vmem:[#allocation7 + $0x7d0] sm:$0xff]
    %v501 = vld [vmem:[#allocation7 + $0x7d8] sm:$0xff]
    %v502 = vld [vmem:[#allocation7 + $0x7e0] sm:$0xff]
    %v503 = vld [vmem:[#allocation7 + $0x7e8] sm:$0xff]
    %v504 = vld [vmem:[#allocation7 + $0x7f0] sm:$0xff]
    %v505 = vld [vmem:[#allocation7 + $0x7f8] sm:$0xff]
    %v506 = vld [vmem:[#allocation7 + $0x800] sm:$0xff]
    %v507 = vld [vmem:[#allocation7 + $0x808] sm:$0xff]
    %v508 = vld [vmem:[#allocation7 + $0x810] sm:$0xff]
    %v509 = vld [vmem:[#allocation7 + $0x818] sm:$0xff]
    %v510 = vld [vmem:[#allocation7 + $0x820] sm:$0xff]
    %v511 = vld [vmem:[#allocation7 + $0x828] sm:$0xff]
    %v512 = vld [vmem:[#allocation7 + $0x830] sm:$0xff]
    %v513 = vld [vmem:[#allocation7 + $0x838] sm:$0xff]
    %v514 = vld [vmem:[#allocation7 + $0x840] sm:$0xff]
    %v515 = vld [vmem:[#allocation7 + $0x848] sm:$0xff]
    %v516 = vld [vmem:[#allocation7 + $0x850] sm:$0xff]
    %v517 = vld [vmem:[#allocation7 + $0x858] sm:$0xff]
    %v518 = vld [vmem:[#allocation7 + $0x860] sm:$0xff]
    %v519 = vld [vmem:[#allocation7 + $0x868] sm:$0xff]
    %v520 = vld [vmem:[#allocation7 + $0x870] sm:$0xff]
    %v521 = vld [vmem:[#allocation7 + $0x878] sm:$0xff]
    %v522 = vld [vmem:[#allocation7 + $0x880] sm:$0xff]
    %v523 = vld [vmem:[#allocation7 + $0x888] sm:$0xff]
    %v524 = vld [vmem:[#allocation7 + $0x890] sm:$0xff]
    %v525 = vld [vmem:[#allocation7 + $0x898] sm:$0xff]
    %v526 = vld [vmem:[#allocation7 + $0x8a0] sm:$0xff]
    %v527 = vld [vmem:[#allocation7 + $0x8a8] sm:$0xff]
    %v528 = vld [vmem:[#allocation7 + $0x8b0] sm:$0xff]
    %v529 = vld [vmem:[#allocation7 + $0x8b8] sm:$0xff]
    %v530 = vld [vmem:[#allocation7 + $0x8c0] sm:$0xff]
    %v531 = vld [vmem:[#allocation7 + $0x8c8] sm:$0xff]
    %v532 = vld [vmem:[#allocation7 + $0x8d0] sm:$0xff]
    %v533 = vld [vmem:[#allocation7 + $0x8d8] sm:$0xff]
    %v534 = vld [vmem:[#allocation7 + $0x8e0] sm:$0xff]
    %v535 = vld [vmem:[#allocation7 + $0x8e8] sm:$0xff]
    %v536 = vld [vmem:[#allocation7 + $0x8f0] sm:$0xff]
    %v537 = vld [vmem:[#allocation7 + $0x8f8] sm:$0xff]
    %v538 = vld [vmem:[#allocation7 + $0x900] sm:$0xff]
    %v539 = vld [vmem:[#allocation7 + $0x908] sm:$0xff]
    %v540 = vld [vmem:[#allocation7 + $0x910] sm:$0xff]
    %v541 = vld [vmem:[#allocation7 + $0x918] sm:$0xff]
    %v542 = vld [vmem:[#allocation7 + $0x920] sm:$0xff]
    %v543 = vld [vmem:[#allocation7 + $0x928] sm:$0xff]
    %v544 = vld [vmem:[#allocation7 + $0x930] sm:$0xff]
    %v545 = vld [vmem:[#allocation7 + $0x938] sm:$0xff]
    %v546 = vld [vmem:[#allocation7 + $0x940] sm:$0xff]
    %v547 = vld [vmem:[#allocation7 + $0x948] sm:$0xff]
    %v548 = vld [vmem:[#allocation7 + $0x950] sm:$0xff]
    %v549 = vld [vmem:[#allocation7 + $0x958] sm:$0xff]
    %v550 = vld [vmem:[#allocation7 + $0x960] sm:$0xff]
    %v551 = vld [vmem:[#allocation7 + $0x968] sm:$0xff]
    %v552 = vld [vmem:[#allocation7 + $0x970] sm:$0xff]
    %v553 = vld [vmem:[#allocation7 + $0x978] sm:$0xff]
    %v554 = vld [vmem:[#allocation7 + $0x980] sm:$0xff]
    %v555 = vld [vmem:[#allocation7 + $0x988] sm:$0xff]
    %v556 = vld [vmem:[#allocation7 + $0x990] sm:$0xff]
    %v557 = vld [vmem:[#allocation7 + $0x998] sm:$0xff]
    %v558 = vld [vmem:[#allocation7 + $0x9a0] sm:$0xff]
    %v559 = vld [vmem:[#allocation7 + $0x9a8] sm:$0xff]
    %v560 = vld [vmem:[#allocation7 + $0x9b0] sm:$0xff]
    %v561 = vld [vmem:[#allocation7 + $0x9b8] sm:$0xff]
    %v562 = vld [vmem:[#allocation7 + $0x9c0] sm:$0xff]
    %v563 = vld [vmem:[#allocation7 + $0x9c8] sm:$0xff]
    %v564 = vld [vmem:[#allocation7 + $0x9d0] sm:$0xff]
    %v565 = vld [vmem:[#allocation7 + $0x9d8] sm:$0xff]
    %v566 = vld [vmem:[#allocation7 + $0x9e0] sm:$0xff]
    %v567 = vld [vmem:[#allocation7 + $0x9e8] sm:$0xff]
    %v568 = vld [vmem:[#allocation7 + $0x9f0] sm:$0xff]
    %v569 = vld [vmem:[#allocation7 + $0x9f8] sm:$0xff]
    %v570 = vld [vmem:[#allocation7 + $0xa00] sm:$0xff]
    %v571 = vld [vmem:[#allocation7 + $0xa08] sm:$0xff]
    %v572 = vld [vmem:[#allocation7 + $0xa10] sm:$0xff]
    %v573 = vld [vmem:[#allocation7 + $0xa18] sm:$0xff]
    %v574 = vld [vmem:[#allocation7 + $0xa20] sm:$0xff]
    %v575 = vld [vmem:[#allocation7 + $0xa28] sm:$0xff]
    %v576 = vld [vmem:[#allocation7 + $0xa30] sm:$0xff]
    %v577 = vld [vmem:[#allocation7 + $0xa38] sm:$0xff]
    %v578 = vld [vmem:[#allocation7 + $0xa40] sm:$0xff]
    %v579 = vld [vmem:[#allocation7 + $0xa48] sm:$0xff]
    %v580 = vld [vmem:[#allocation7 + $0xa50] sm:$0xff]
    %v581 = vld [vmem:[#allocation7 + $0xa58] sm:$0xff]
    %v582 = vld [vmem:[#allocation7 + $0xa60] sm:$0xff]
    %v583 = vld [vmem:[#allocation7 + $0xa68] sm:$0xff]
    %v584 = vld [vmem:[#allocation7 + $0xa70] sm:$0xff]
    %v585 = vld [vmem:[#allocation7 + $0xa78] sm:$0xff]
    %v586 = vld [vmem:[#allocation7 + $0xa80] sm:$0xff]
    %v587 = vld [vmem:[#allocation7 + $0xa88] sm:$0xff]
    %v588 = vld [vmem:[#allocation7 + $0xa90] sm:$0xff]
    %v589 = vld [vmem:[#allocation7 + $0xa98] sm:$0xff]
    %v590 = vld [vmem:[#allocation7 + $0xaa0] sm:$0xff]
    %v591 = vld [vmem:[#allocation7 + $0xaa8] sm:$0xff]
    %v592 = vld [vmem:[#allocation7 + $0xab0] sm:$0xff]
    %v593 = vld [vmem:[#allocation7 + $0xab8] sm:$0xff]
    %v594 = vld [vmem:[#allocation7 + $0xac0] sm:$0xff]
    %v595 = vld [vmem:[#allocation7 + $0xac8] sm:$0xff]
    %v596 = vld [vmem:[#allocation7 + $0xad0] sm:$0xff]
    %v597 = vld [vmem:[#allocation7 + $0xad8] sm:$0xff]
    %v598 = vld [vmem:[#allocation7 + $0xae0] sm:$0xff]
    %v599 = vld [vmem:[#allocation7 + $0xae8] sm:$0xff]
    %v600 = vld [vmem:[#allocation7 + $0xaf0] sm:$0xff]
    %v601 = vld [vmem:[#allocation7 + $0xaf8] sm:$0xff]
    %v602 = vld [vmem:[#allocation7 + $0xb00] sm:$0xff]
    %v603 = vld [vmem:[#allocation7 + $0xb08] sm:$0xff]
    %v604 = vld [vmem:[#allocation7 + $0xb10] sm:$0xff]
    %v605 = vld [vmem:[#allocation7 + $0xb18] sm:$0xff]
    %v606 = vld [vmem:[#allocation7 + $0xb20] sm:$0xff]
    %v607 = vld [vmem:[#allocation7 + $0xb28] sm:$0xff]
    %v608 = vld [vmem:[#allocation7 + $0xb30] sm:$0xff]
    %v609 = vld [vmem:[#allocation7 + $0xb38] sm:$0xff]
    %v610 = vld [vmem:[#allocation7 + $0xb40] sm:$0xff]
    %v611 = vld [vmem:[#allocation7 + $0xb48] sm:$0xff]
    %v612 = vld [vmem:[#allocation7 + $0xb50] sm:$0xff]
    %v613 = vld [vmem:[#allocation7 + $0xb58] sm:$0xff]
    %v614 = vld [vmem:[#allocation7 + $0xb60] sm:$0xff]
    %v615 = vld [vmem:[#allocation7 + $0xb68] sm:$0xff]
    %v616 = vld [vmem:[#allocation7 + $0xb70] sm:$0xff]
    %v617 = vld [vmem:[#allocation7 + $0xb78] sm:$0xff]
    %v618 = vld [vmem:[#allocation7 + $0xb80] sm:$0xff]
    %v619 = vld [vmem:[#allocation7 + $0xb88] sm:$0xff]
    %v620 = vld [vmem:[#allocation7 + $0xb90] sm:$0xff]
    %v621 = vld [vmem:[#allocation7 + $0xb98] sm:$0xff]
    %v622 = vld [vmem:[#allocation7 + $0xba0] sm:$0xff]
    %v623 = vld [vmem:[#allocation7 + $0xba8] sm:$0xff]
    %v624 = vld [vmem:[#allocation7 + $0xbb0] sm:$0xff]
    %v625 = vld [vmem:[#allocation7 + $0xbb8] sm:$0xff]
    %v626 = vld [vmem:[#allocation7 + $0xbc0] sm:$0xff]
    %v627 = vld [vmem:[#allocation7 + $0xbc8] sm:$0xff]
    %v628 = vld [vmem:[#allocation7 + $0xbd0] sm:$0xff]
    %v629 = vld [vmem:[#allocation7 + $0xbd8] sm:$0xff]
    %v630 = vld [vmem:[#allocation7 + $0xbe0] sm:$0xff]
    %v631 = vld [vmem:[#allocation7 + $0xbe8] sm:$0xff]
    %v632 = vld [vmem:[#allocation7 + $0xbf0] sm:$0xff]
    %v633 = vld [vmem:[#allocation7 + $0xbf8] sm:$0xff]
    %v634 = vld [vmem:[#allocation7 + $0xc00] sm:$0xff]
    %v635 = vld [vmem:[#allocation7 + $0xc08] sm:$0xff]
    %v636 = vld [vmem:[#allocation7 + $0xc10] sm:$0xff]
    %v637 = vld [vmem:[#allocation7 + $0xc18] sm:$0xff]
    %v638 = vld [vmem:[#allocation7 + $0xc20] sm:$0xff]
    %v639 = vld [vmem:[#allocation7 + $0xc28] sm:$0xff]
    %v640 = vld [vmem:[#allocation7 + $0xc30] sm:$0xff]
    %v641 = vld [vmem:[#allocation7 + $0xc38] sm:$0xff]
    %v642 = vld [vmem:[#allocation7 + $0xc40] sm:$0xff]
    %v643 = vld [vmem:[#allocation7 + $0xc48] sm:$0xff]
    %v644 = vld [vmem:[#allocation7 + $0xc50] sm:$0xff]
    %v645 = vld [vmem:[#allocation7 + $0xc58] sm:$0xff]
    %v646 = vld [vmem:[#allocation7 + $0xc60] sm:$0xff]
    %v647 = vld [vmem:[#allocation7 + $0xc68] sm:$0xff]
    %v648 = vld [vmem:[#allocation7 + $0xc70] sm:$0xff]
    %v649 = vld [vmem:[#allocation7 + $0xc78] sm:$0xff]
    %v650 = vld [vmem:[#allocation7 + $0xc80] sm:$0xff]
    %v651 = vld [vmem:[#allocation7 + $0xc88] sm:$0xff]
    %v652 = vld [vmem:[#allocation7 + $0xc90] sm:$0xff]
    %v653 = vld [vmem:[#allocation7 + $0xc98] sm:$0xff]
    %v654 = vld [vmem:[#allocation7 + $0xca0] sm:$0xff]
    %v655 = vld [vmem:[#allocation7 + $0xca8] sm:$0xff]
    %v656 = vld [vmem:[#allocation7 + $0xcb0] sm:$0xff]
    %v657 = vld [vmem:[#allocation7 + $0xcb8] sm:$0xff]
    %v658 = vld [vmem:[#allocation7 + $0xcc0] sm:$0xff]
    %v659 = vld [vmem:[#allocation7 + $0xcc8] sm:$0xff]
    %v660 = vld [vmem:[#allocation7 + $0xcd0] sm:$0xff]
    %v661 = vld [vmem:[#allocation7 + $0xcd8] sm:$0xff]
    %v662 = vld [vmem:[#allocation7 + $0xce0] sm:$0xff]
    %v663 = vld [vmem:[#allocation7 + $0xce8] sm:$0xff]
    %v664 = vld [vmem:[#allocation7 + $0xcf0] sm:$0xff]
    %v665 = vld [vmem:[#allocation7 + $0xcf8] sm:$0xff]
    %v666 = vld [vmem:[#allocation7 + $0xd00] sm:$0xff]
    %v667 = vld [vmem:[#allocation7 + $0xd08] sm:$0xff]
    %v668 = vld [vmem:[#allocation7 + $0xd10] sm:$0xff]
    %v669 = vld [vmem:[#allocation7 + $0xd18] sm:$0xff]
    %v670 = vld [vmem:[#allocation7 + $0xd20] sm:$0xff]
    %v671 = vld [vmem:[#allocation7 + $0xd28] sm:$0xff]
    %v672 = vld [vmem:[#allocation7 + $0xd30] sm:$0xff]
    %v673 = vld [vmem:[#allocation7 + $0xd38] sm:$0xff]
    %v674 = vld [vmem:[#allocation7 + $0xd40] sm:$0xff]
    %v675 = vld [vmem:[#allocation7 + $0xd48] sm:$0xff]
    %v676 = vld [vmem:[#allocation7 + $0xd50] sm:$0xff]
    %v677 = vld [vmem:[#allocation7 + $0xd58] sm:$0xff]
    %v678 = vld [vmem:[#allocation7 + $0xd60] sm:$0xff]
    %v679 = vld [vmem:[#allocation7 + $0xd68] sm:$0xff]
    %v680 = vld [vmem:[#allocation7 + $0xd70] sm:$0xff]
    %v681 = vld [vmem:[#allocation7 + $0xd78] sm:$0xff]
    %v682 = vld [vmem:[#allocation7 + $0xd80] sm:$0xff]
    %v683 = vld [vmem:[#allocation7 + $0xd88] sm:$0xff]
    %v684 = vld [vmem:[#allocation7 + $0xd90] sm:$0xff]
    %v685 = vld [vmem:[#allocation7 + $0xd98] sm:$0xff]
    %v686 = vld [vmem:[#allocation7 + $0xda0] sm:$0xff]
    %v687 = vld [vmem:[#allocation7 + $0xda8] sm:$0xff]
    %v688 = vld [vmem:[#allocation7 + $0xdb0] sm:$0xff]
    %v689 = vld [vmem:[#allocation7 + $0xdb8] sm:$0xff]
    %v690 = vld [vmem:[#allocation7 + $0xdc0] sm:$0xff]
    %v691 = vld [vmem:[#allocation7 + $0xdc8] sm:$0xff]
    %v692 = vld [vmem:[#allocation7 + $0xdd0] sm:$0xff]
    %v693 = vld [vmem:[#allocation7 + $0xdd8] sm:$0xff]
    %v694 = vld [vmem:[#allocation7 + $0xde0] sm:$0xff]
    %v695 = vld [vmem:[#allocation7 + $0xde8] sm:$0xff]
    %v696 = vld [vmem:[#allocation7 + $0xdf0] sm:$0xff]
    %v697 = vld [vmem:[#allocation7 + $0xdf8] sm:$0xff]
    %v698 = vld [vmem:[#allocation7 + $0xe00] sm:$0xff]
    %v699 = vld [vmem:[#allocation7 + $0xe08] sm:$0xff]
    %v700 = vld [vmem:[#allocation7 + $0xe10] sm:$0xff]
    %v701 = vld [vmem:[#allocation7 + $0xe18] sm:$0xff]
    %v702 = vld [vmem:[#allocation7 + $0xe20] sm:$0xff]
    %v703 = vld [vmem:[#allocation7 + $0xe28] sm:$0xff]
    %v704 = vld [vmem:[#allocation7 + $0xe30] sm:$0xff]
    %v705 = vld [vmem:[#allocation7 + $0xe38] sm:$0xff]
    %v706 = vld [vmem:[#allocation7 + $0xe40] sm:$0xff]
    %v707 = vld [vmem:[#allocation7 + $0xe48] sm:$0xff]
    %v708 = vld [vmem:[#allocation7 + $0xe50] sm:$0xff]
    %v709 = vld [vmem:[#allocation7 + $0xe58] sm:$0xff]
    %v710 = vld [vmem:[#allocation7 + $0xe60] sm:$0xff]
    %v711 = vld [vmem:[#allocation7 + $0xe68] sm:$0xff]
    %v712 = vld [vmem:[#allocation7 + $0xe70] sm:$0xff]
    %v713 = vld [vmem:[#allocation7 + $0xe78] sm:$0xff]
    %v714 = vld [vmem:[#allocation7 + $0xe80] sm:$0xff]
    %v715 = vld [vmem:[#allocation7 + $0xe88] sm:$0xff]
    %v716 = vld [vmem:[#allocation7 + $0xe90] sm:$0xff]
    %v717 = vld [vmem:[#allocation7 + $0xe98] sm:$0xff]
    %v718 = vld [vmem:[#allocation7 + $0xea0] sm:$0xff]
    %v719 = vld [vmem:[#allocation7 + $0xea8] sm:$0xff]
    %v720 = vld [vmem:[#allocation7 + $0xeb0] sm:$0xff]
    %v721 = vld [vmem:[#allocation7 + $0xeb8] sm:$0xff]
    %v722 = vld [vmem:[#allocation7 + $0xec0] sm:$0xff]
    %v723 = vld [vmem:[#allocation7 + $0xec8] sm:$0xff]
    %v724 = vld [vmem:[#allocation7 + $0xed0] sm:$0xff]
    %v725 = vld [vmem:[#allocation7 + $0xed8] sm:$0xff]
    %v726 = vld [vmem:[#allocation7 + $0xee0] sm:$0xff]
    %v727 = vld [vmem:[#allocation7 + $0xee8] sm:$0xff]
    %v728 = vld [vmem:[#allocation7 + $0xef0] sm:$0xff]
    %v729 = vld [vmem:[#allocation7 + $0xef8] sm:$0xff]
    %v730 = vld [vmem:[#allocation7 + $0xf00] sm:$0xff]
    %v731 = vld [vmem:[#allocation7 + $0xf08] sm:$0xff]
    %v732 = vld [vmem:[#allocation7 + $0xf10] sm:$0xff]
    %v733 = vld [vmem:[#allocation7 + $0xf18] sm:$0xff]
    %v734 = vld [vmem:[#allocation7 + $0xf20] sm:$0xff]
    %v735 = vld [vmem:[#allocation7 + $0xf28] sm:$0xff]
    %v736 = vld [vmem:[#allocation7 + $0xf30] sm:$0xff]
    %v737 = vld [vmem:[#allocation7 + $0xf38] sm:$0xff]
    %v738 = vld [vmem:[#allocation7 + $0xf40] sm:$0xff]
    %v739 = vld [vmem:[#allocation7 + $0xf48] sm:$0xff]
    %v740 = vld [vmem:[#allocation7 + $0xf50] sm:$0xff]
    %v741 = vld [vmem:[#allocation7 + $0xf58] sm:$0xff]
    %v742 = vld [vmem:[#allocation7 + $0xf60] sm:$0xff]
    %v743 = vld [vmem:[#allocation7 + $0xf68] sm:$0xff]
    %v744 = vld [vmem:[#allocation7 + $0xf70] sm:$0xff]
    %v745 = vld [vmem:[#allocation7 + $0xf78] sm:$0xff]
    %v746 = vld [vmem:[#allocation7 + $0xf80] sm:$0xff]
    %v747 = vld [vmem:[#allocation7 + $0xf88] sm:$0xff]
    %v748 = vld [vmem:[#allocation7 + $0xf90] sm:$0xff]
    %v749 = vld [vmem:[#allocation7 + $0xf98] sm:$0xff]
    %v750 = vld [vmem:[#allocation7 + $0xfa0] sm:$0xff]
    %v751 = vld [vmem:[#allocation7 + $0xfa8] sm:$0xff]
    %v752 = vld [vmem:[#allocation7 + $0xfb0] sm:$0xff]
    %v753 = vld [vmem:[#allocation7 + $0xfb8] sm:$0xff]
    %v754 = vld [vmem:[#allocation7 + $0xfc0] sm:$0xff]
    %v755 = vld [vmem:[#allocation7 + $0xfc8] sm:$0xff]
    %v756 = vld [vmem:[#allocation7 + $0xfd0] sm:$0xff]
    %v757 = vld [vmem:[#allocation7 + $0xfd8] sm:$0xff]
    %v758 = vld [vmem:[#allocation7 + $0xfe0] sm:$0xff]
    %v759 = vld [vmem:[#allocation7 + $0xfe8] sm:$0xff]
    %v760 = vld [vmem:[#allocation7 + $0xff0] sm:$0xff]
    %v761 = vld [vmem:[#allocation7 + $0xff8] sm:$0xff]
    %v762 = vld [vmem:[#allocation7 + $0x1000] sm:$0xff]
    %v763 = vld [vmem:[#allocation7 + $0x1008] sm:$0xff]
    %v764 = vld [vmem:[#allocation7 + $0x1010] sm:$0xff]
    %v765 = vld [vmem:[#allocation7 + $0x1018] sm:$0xff]
    %v766 = vld [vmem:[#allocation7 + $0x1020] sm:$0xff]
    %v767 = vld [vmem:[#allocation7 + $0x1028] sm:$0xff]
    %v768 = vld [vmem:[#allocation7 + $0x1030] sm:$0xff]
    %v769 = vld [vmem:[#allocation7 + $0x1038] sm:$0xff]
    %v770 = vld [vmem:[#allocation7 + $0x1040] sm:$0xff]
    %v771 = vld [vmem:[#allocation7 + $0x1048] sm:$0xff]
    %v772 = vld [vmem:[#allocation7 + $0x1050] sm:$0xff]
    %v773 = vld [vmem:[#allocation7 + $0x1058] sm:$0xff]
    %v774 = vld [vmem:[#allocation7 + $0x1060] sm:$0xff]
    %v775 = vld [vmem:[#allocation7 + $0x1068] sm:$0xff]
    %v776 = vld [vmem:[#allocation7 + $0x1070] sm:$0xff]
    %v777 = vld [vmem:[#allocation7 + $0x1078] sm:$0xff]
    %v778 = vld [vmem:[#allocation7 + $0x1080] sm:$0xff]
    %v779 = vld [vmem:[#allocation7 + $0x1088] sm:$0xff]
    %v780 = vld [vmem:[#allocation7 + $0x1090] sm:$0xff]
    %v781 = vld [vmem:[#allocation7 + $0x1098] sm:$0xff]
    %v782 = vld [vmem:[#allocation7 + $0x10a0] sm:$0xff]
    %v783 = vld [vmem:[#allocation7 + $0x10a8] sm:$0xff]
    %v784 = vld [vmem:[#allocation7 + $0x10b0] sm:$0xff]
    %v785 = vld [vmem:[#allocation7 + $0x10b8] sm:$0xff]
    %v786 = vld [vmem:[#allocation7 + $0x10c0] sm:$0xff]
    %v787 = vld [vmem:[#allocation7 + $0x10c8] sm:$0xff]
    %v788 = vld [vmem:[#allocation7 + $0x10d0] sm:$0xff]
    %v789 = vld [vmem:[#allocation7 + $0x10d8] sm:$0xff]
    %v790 = vld [vmem:[#allocation7 + $0x10e0] sm:$0xff]
    %v791 = vld [vmem:[#allocation7 + $0x10e8] sm:$0xff]
    %v792 = vld [vmem:[#allocation7 + $0x10f0] sm:$0xff]
    %v793 = vld [vmem:[#allocation7 + $0x10f8] sm:$0xff]
    %v794 = vld [vmem:[#allocation7 + $0x1100] sm:$0xff]
    %v795 = vld [vmem:[#allocation7 + $0x1108] sm:$0xff]
    %v796 = vld [vmem:[#allocation7 + $0x1110] sm:$0xff]
    %v797 = vld [vmem:[#allocation7 + $0x1118] sm:$0xff]
    %v798 = vld [vmem:[#allocation7 + $0x1120] sm:$0xff]
    %v799 = vld [vmem:[#allocation7 + $0x1128] sm:$0xff]
    %v800 = vld [vmem:[#allocation7 + $0x1130] sm:$0xff]
    %v801 = vld [vmem:[#allocation7 + $0x1138] sm:$0xff]
    %v802 = vld [vmem:[#allocation7 + $0x1140] sm:$0xff]
    %v803 = vld [vmem:[#allocation7 + $0x1148] sm:$0xff]
    %v804 = vld [vmem:[#allocation7 + $0x1150] sm:$0xff]
    %v805 = vld [vmem:[#allocation7 + $0x1158] sm:$0xff]
    %v806 = vld [vmem:[#allocation7 + $0x1160] sm:$0xff]
    %v807 = vld [vmem:[#allocation7 + $0x1168] sm:$0xff]
    %v808 = vld [vmem:[#allocation7 + $0x1170] sm:$0xff]
    %v809 = vld [vmem:[#allocation7 + $0x1178] sm:$0xff]
    %v810 = vld [vmem:[#allocation7 + $0x1180] sm:$0xff]
    %v811 = vld [vmem:[#allocation7 + $0x1188] sm:$0xff]
    %v812 = vld [vmem:[#allocation7 + $0x1190] sm:$0xff]
    %v813 = vld [vmem:[#allocation7 + $0x1198] sm:$0xff]
    %v814 = vld [vmem:[#allocation7 + $0x11a0] sm:$0xff]
    %v815 = vld [vmem:[#allocation7 + $0x11a8] sm:$0xff]
    %v816 = vld [vmem:[#allocation7 + $0x11b0] sm:$0xff]
    %v817 = vld [vmem:[#allocation7 + $0x11b8] sm:$0xff]
    %v818 = vld [vmem:[#allocation7 + $0x11c0] sm:$0xff]
    %v819 = vld [vmem:[#allocation7 + $0x11c8] sm:$0xff]
    %v820 = vld [vmem:[#allocation7 + $0x11d0] sm:$0xff]
    %v821 = vld [vmem:[#allocation7 + $0x11d8] sm:$0xff]
    %v822 = vld [vmem:[#allocation7 + $0x11e0] sm:$0xff]
    %v823 = vld [vmem:[#allocation7 + $0x11e8] sm:$0xff]
    %v824 = vld [vmem:[#allocation7 + $0x11f0] sm:$0xff]
    %v825 = vld [vmem:[#allocation7 + $0x11f8] sm:$0xff]
    %v826 = vld [vmem:[#allocation8] sm:$0xff]
    %v827 = vld [vmem:[#allocation8 + $0x8] sm:$0xff]
    %v828 = vld [vmem:[#allocation8 + $0x10] sm:$0xff]
    %v829 = vld [vmem:[#allocation8 + $0x18] sm:$0xff]
    %v830 = vld [vmem:[#allocation8 + $0x20] sm:$0xff]
    %v831 = vld [vmem:[#allocation8 + $0x28] sm:$0xff]
    %v832 = vld [vmem:[#allocation8 + $0x30] sm:$0xff]
    %v833 = vld [vmem:[#allocation8 + $0x38] sm:$0xff]
    %v834 = vld [vmem:[#allocation8 + $0x40] sm:$0xff]
    %v835 = vld [vmem:[#allocation8 + $0x48] sm:$0xff]
    %v836 = vld [vmem:[#allocation8 + $0x50] sm:$0xff]
    %v837 = vld [vmem:[#allocation8 + $0x58] sm:$0xff]
    %v838 = vld [vmem:[#allocation8 + $0x60] sm:$0xff]
    %v839 = vld [vmem:[#allocation8 + $0x68] sm:$0xff]
    %v840 = vld [vmem:[#allocation8 + $0x70] sm:$0xff]
    %v841 = vld [vmem:[#allocation8 + $0x78] sm:$0xff]
    %v842 = vld [vmem:[#allocation8 + $0x80] sm:$0xff]
    %v843 = vld [vmem:[#allocation8 + $0x88] sm:$0xff]
    %v844 = vld [vmem:[#allocation8 + $0x90] sm:$0xff]
    %v845 = vld [vmem:[#allocation8 + $0x98] sm:$0xff]
    %v846 = vld [vmem:[#allocation8 + $0xa0] sm:$0xff]
    %v847 = vld [vmem:[#allocation8 + $0xa8] sm:$0xff]
    %v848 = vld [vmem:[#allocation8 + $0xb0] sm:$0xff]
    %v849 = vld [vmem:[#allocation8 + $0xb8] sm:$0xff]
    %v850 = vld [vmem:[#allocation8 + $0xc0] sm:$0xff]
    %v851 = vld [vmem:[#allocation8 + $0xc8] sm:$0xff]
    %v852 = vld [vmem:[#allocation8 + $0xd0] sm:$0xff]
    %v853 = vld [vmem:[#allocation8 + $0xd8] sm:$0xff]
    %v854 = vld [vmem:[#allocation8 + $0xe0] sm:$0xff]
    %v855 = vld [vmem:[#allocation8 + $0xe8] sm:$0xff]
    %v856 = vld [vmem:[#allocation8 + $0xf0] sm:$0xff]
    %v857 = vld [vmem:[#allocation8 + $0xf8] sm:$0xff]
    %v858 = vld [vmem:[#allocation8 + $0x100] sm:$0xff]
    %v859 = vld [vmem:[#allocation8 + $0x108] sm:$0xff]
    %v860 = vld [vmem:[#allocation8 + $0x110] sm:$0xff]
    %v861 = vld [vmem:[#allocation8 + $0x118] sm:$0xff]
    %v862 = vld [vmem:[#allocation8 + $0x120] sm:$0xff]
    %v863 = vld [vmem:[#allocation8 + $0x128] sm:$0xff]
    %v864 = vld [vmem:[#allocation8 + $0x130] sm:$0xff]
    %v865 = vld [vmem:[#allocation8 + $0x138] sm:$0xff]
    %v866 = vld [vmem:[#allocation8 + $0x140] sm:$0xff]
    %v867 = vld [vmem:[#allocation8 + $0x148] sm:$0xff]
    %v868 = vld [vmem:[#allocation8 + $0x150] sm:$0xff]
    %v869 = vld [vmem:[#allocation8 + $0x158] sm:$0xff]
    %v870 = vld [vmem:[#allocation8 + $0x160] sm:$0xff]
    %v871 = vld [vmem:[#allocation8 + $0x168] sm:$0xff]
    %v872 = vld [vmem:[#allocation8 + $0x170] sm:$0xff]
    %v873 = vld [vmem:[#allocation8 + $0x178] sm:$0xff]
    %v874 = vld [vmem:[#allocation8 + $0x180] sm:$0xff]
    %v875 = vld [vmem:[#allocation8 + $0x188] sm:$0xff]
    %v876 = vld [vmem:[#allocation8 + $0x190] sm:$0xff]
    %v877 = vld [vmem:[#allocation8 + $0x198] sm:$0xff]
    %v878 = vld [vmem:[#allocation8 + $0x1a0] sm:$0xff]
    %v879 = vld [vmem:[#allocation8 + $0x1a8] sm:$0xff]
    %v880 = vld [vmem:[#allocation8 + $0x1b0] sm:$0xff]
    %v881 = vld [vmem:[#allocation8 + $0x1b8] sm:$0xff]
    %v882 = vld [vmem:[#allocation8 + $0x1c0] sm:$0xff]
    %v883 = vld [vmem:[#allocation8 + $0x1c8] sm:$0xff]
    %v884 = vld [vmem:[#allocation8 + $0x1d0] sm:$0xff]
    %v885 = vld [vmem:[#allocation8 + $0x1d8] sm:$0xff]
    %v886 = vld [vmem:[#allocation8 + $0x1e0] sm:$0xff]
    %v887 = vld [vmem:[#allocation8 + $0x1e8] sm:$0xff]
    %v888 = vld [vmem:[#allocation8 + $0x1f0] sm:$0xff]
    %v889 = vld [vmem:[#allocation8 + $0x1f8] sm:$0xff]
    %v890 = vld [vmem:[#allocation8 + $0x200] sm:$0xff]
    %v891 = vld [vmem:[#allocation8 + $0x208] sm:$0xff]
    %v892 = vld [vmem:[#allocation8 + $0x210] sm:$0xff]
    %v893 = vld [vmem:[#allocation8 + $0x218] sm:$0xff]
    %v894 = vld [vmem:[#allocation8 + $0x220] sm:$0xff]
    %v895 = vld [vmem:[#allocation8 + $0x228] sm:$0xff]
    %v896 = vld [vmem:[#allocation8 + $0x230] sm:$0xff]
    %v897 = vld [vmem:[#allocation8 + $0x238] sm:$0xff]
    %v898 = vld [vmem:[#allocation8 + $0x240] sm:$0xff]
    %v899 = vld [vmem:[#allocation8 + $0x248] sm:$0xff]
    %v900 = vld [vmem:[#allocation8 + $0x250] sm:$0xff]
    %v901 = vld [vmem:[#allocation8 + $0x258] sm:$0xff]
    %v902 = vld [vmem:[#allocation8 + $0x260] sm:$0xff]
    %v903 = vld [vmem:[#allocation8 + $0x268] sm:$0xff]
    %v904 = vld [vmem:[#allocation8 + $0x270] sm:$0xff]
    %v905 = vld [vmem:[#allocation8 + $0x278] sm:$0xff]
    %v906 = vld [vmem:[#allocation8 + $0x280] sm:$0xff]
    %v907 = vld [vmem:[#allocation8 + $0x288] sm:$0xff]
    %v908 = vld [vmem:[#allocation8 + $0x290] sm:$0xff]
    %v909 = vld [vmem:[#allocation8 + $0x298] sm:$0xff]
    %v910 = vld [vmem:[#allocation8 + $0x2a0] sm:$0xff]
    %v911 = vld [vmem:[#allocation8 + $0x2a8] sm:$0xff]
    %v912 = vld [vmem:[#allocation8 + $0x2b0] sm:$0xff]
    %v913 = vld [vmem:[#allocation8 + $0x2b8] sm:$0xff]
    %v914 = vld [vmem:[#allocation8 + $0x2c0] sm:$0xff]
    %v915 = vld [vmem:[#allocation8 + $0x2c8] sm:$0xff]
    %v916 = vld [vmem:[#allocation8 + $0x2d0] sm:$0xff]
    %v917 = vld [vmem:[#allocation8 + $0x2d8] sm:$0xff]
    %v918 = vld [vmem:[#allocation8 + $0x2e0] sm:$0xff]
    %v919 = vld [vmem:[#allocation8 + $0x2e8] sm:$0xff]
    %v920 = vld [vmem:[#allocation8 + $0x2f0] sm:$0xff]
    %v921 = vld [vmem:[#allocation8 + $0x2f8] sm:$0xff]
    %v922 = vld [vmem:[#allocation8 + $0x300] sm:$0xff]
    %v923 = vld [vmem:[#allocation8 + $0x308] sm:$0xff]
    %v924 = vld [vmem:[#allocation8 + $0x310] sm:$0xff]
    %v925 = vld [vmem:[#allocation8 + $0x318] sm:$0xff]
    %v926 = vld [vmem:[#allocation8 + $0x320] sm:$0xff]
    %v927 = vld [vmem:[#allocation8 + $0x328] sm:$0xff]
    %v928 = vld [vmem:[#allocation8 + $0x330] sm:$0xff]
    %v929 = vld [vmem:[#allocation8 + $0x338] sm:$0xff]
    %v930 = vld [vmem:[#allocation8 + $0x340] sm:$0xff]
    %v931 = vld [vmem:[#allocation8 + $0x348] sm:$0xff]
    %v932 = vld [vmem:[#allocation8 + $0x350] sm:$0xff]
    %v933 = vld [vmem:[#allocation8 + $0x358] sm:$0xff]
    %v934 = vld [vmem:[#allocation8 + $0x360] sm:$0xff]
    %v935 = vld [vmem:[#allocation8 + $0x368] sm:$0xff]
    %v936 = vld [vmem:[#allocation8 + $0x370] sm:$0xff]
    %v937 = vld [vmem:[#allocation8 + $0x378] sm:$0xff]
    %v938 = vld [vmem:[#allocation8 + $0x380] sm:$0xff]
    %v939 = vld [vmem:[#allocation8 + $0x388] sm:$0xff]
    %v940 = vld [vmem:[#allocation8 + $0x390] sm:$0xff]
    %v941 = vld [vmem:[#allocation8 + $0x398] sm:$0xff]
    %v942 = vld [vmem:[#allocation8 + $0x3a0] sm:$0xff]
    %v943 = vld [vmem:[#allocation8 + $0x3a8] sm:$0xff]
    %v944 = vld [vmem:[#allocation8 + $0x3b0] sm:$0xff]
    %v945 = vld [vmem:[#allocation8 + $0x3b8] sm:$0xff]
    %v946 = vld [vmem:[#allocation8 + $0x3c0] sm:$0xff]
    %v947 = vld [vmem:[#allocation8 + $0x3c8] sm:$0xff]
    %v948 = vld [vmem:[#allocation8 + $0x3d0] sm:$0xff]
    %v949 = vld [vmem:[#allocation8 + $0x3d8] sm:$0xff]
    %v950 = vld [vmem:[#allocation8 + $0x3e0] sm:$0xff]
    %v951 = vld [vmem:[#allocation8 + $0x3e8] sm:$0xff]
    %v952 = vld [vmem:[#allocation8 + $0x3f0] sm:$0xff]
    %v953 = vld [vmem:[#allocation8 + $0x3f8] sm:$0xff]
    %v954 = vld [vmem:[#allocation8 + $0x400] sm:$0xff]
    %v955 = vld [vmem:[#allocation8 + $0x408] sm:$0xff]
    %v956 = vld [vmem:[#allocation8 + $0x410] sm:$0xff]
    %v957 = vld [vmem:[#allocation8 + $0x418] sm:$0xff]
    %v958 = vld [vmem:[#allocation8 + $0x420] sm:$0xff]
    %v959 = vld [vmem:[#allocation8 + $0x428] sm:$0xff]
    %v960 = vld [vmem:[#allocation8 + $0x430] sm:$0xff]
    %v961 = vld [vmem:[#allocation8 + $0x438] sm:$0xff]
    %v962 = vld [vmem:[#allocation8 + $0x440] sm:$0xff]
    %v963 = vld [vmem:[#allocation8 + $0x448] sm:$0xff]
    %v964 = vld [vmem:[#allocation8 + $0x450] sm:$0xff]
    %v965 = vld [vmem:[#allocation8 + $0x458] sm:$0xff]
    %v966 = vld [vmem:[#allocation8 + $0x460] sm:$0xff]
    %v967 = vld [vmem:[#allocation8 + $0x468] sm:$0xff]
    %v968 = vld [vmem:[#allocation8 + $0x470] sm:$0xff]
    %v969 = vld [vmem:[#allocation8 + $0x478] sm:$0xff]
    %v970 = vld [vmem:[#allocation8 + $0x480] sm:$0xff]
    %v971 = vld [vmem:[#allocation8 + $0x488] sm:$0xff]
    %v972 = vld [vmem:[#allocation8 + $0x490] sm:$0xff]
    %v973 = vld [vmem:[#allocation8 + $0x498] sm:$0xff]
    %v974 = vld [vmem:[#allocation8 + $0x4a0] sm:$0xff]
    %v975 = vld [vmem:[#allocation8 + $0x4a8] sm:$0xff]
    %v976 = vld [vmem:[#allocation8 + $0x4b0] sm:$0xff]
    %v977 = vld [vmem:[#allocation8 + $0x4b8] sm:$0xff]
    %v978 = vld [vmem:[#allocation8 + $0x4c0] sm:$0xff]
    %v979 = vld [vmem:[#allocation8 + $0x4c8] sm:$0xff]
    %v980 = vld [vmem:[#allocation8 + $0x4d0] sm:$0xff]
    %v981 = vld [vmem:[#allocation8 + $0x4d8] sm:$0xff]
    %v982 = vld [vmem:[#allocation8 + $0x4e0] sm:$0xff]
    %v983 = vld [vmem:[#allocation8 + $0x4e8] sm:$0xff]
    %v984 = vld [vmem:[#allocation8 + $0x4f0] sm:$0xff]
    %v985 = vld [vmem:[#allocation8 + $0x4f8] sm:$0xff]
    %v986 = vld [vmem:[#allocation8 + $0x500] sm:$0xff]
    %v987 = vld [vmem:[#allocation8 + $0x508] sm:$0xff]
    %v988 = vld [vmem:[#allocation8 + $0x510] sm:$0xff]
    %v989 = vld [vmem:[#allocation8 + $0x518] sm:$0xff]
    %v990 = vld [vmem:[#allocation8 + $0x520] sm:$0xff]
    %v991 = vld [vmem:[#allocation8 + $0x528] sm:$0xff]
    %v992 = vld [vmem:[#allocation8 + $0x530] sm:$0xff]
    %v993 = vld [vmem:[#allocation8 + $0x538] sm:$0xff]
    %v994 = vld [vmem:[#allocation8 + $0x540] sm:$0xff]
    %v995 = vld [vmem:[#allocation8 + $0x548] sm:$0xff]
    %v996 = vld [vmem:[#allocation8 + $0x550] sm:$0xff]
    %v997 = vld [vmem:[#allocation8 + $0x558] sm:$0xff]
    %v998 = vld [vmem:[#allocation8 + $0x560] sm:$0xff]
    %v999 = vld [vmem:[#allocation8 + $0x568] sm:$0xff]
    %v1000 = vld [vmem:[#allocation8 + $0x570] sm:$0xff]
    %v1001 = vld [vmem:[#allocation8 + $0x578] sm:$0xff]
    %v1002 = vld [vmem:[#allocation8 + $0x580] sm:$0xff]
    %v1003 = vld [vmem:[#allocation8 + $0x588] sm:$0xff]
    %v1004 = vld [vmem:[#allocation8 + $0x590] sm:$0xff]
    %v1005 = vld [vmem:[#allocation8 + $0x598] sm:$0xff]
    %v1006 = vld [vmem:[#allocation8 + $0x5a0] sm:$0xff]
    %v1007 = vld [vmem:[#allocation8 + $0x5a8] sm:$0xff]
    %v1008 = vld [vmem:[#allocation8 + $0x5b0] sm:$0xff]
    %v1009 = vld [vmem:[#allocation8 + $0x5b8] sm:$0xff]
    %v1010 = vld [vmem:[#allocation8 + $0x5c0] sm:$0xff]
    %v1011 = vld [vmem:[#allocation8 + $0x5c8] sm:$0xff]
    %v1012 = vld [vmem:[#allocation8 + $0x5d0] sm:$0xff]
    %v1013 = vld [vmem:[#allocation8 + $0x5d8] sm:$0xff]
    %v1014 = vld [vmem:[#allocation8 + $0x5e0] sm:$0xff]
    %v1015 = vld [vmem:[#allocation8 + $0x5e8] sm:$0xff]
    %v1016 = vld [vmem:[#allocation8 + $0x5f0] sm:$0xff]
    %v1017 = vld [vmem:[#allocation8 + $0x5f8] sm:$0xff]
    %vm1022 = vcmask 1041409
    %v1023 = vsel %vm1022, %v248, %v246
    %v1024 = vsel %vm1022, %v249, %v247
    %1027 = vmatprep.subr.mxu0 %v827
    %1028 = vmatpush1.msra.mxu0 %v826
    %1029 = vmatprep.subr.mxu0 %v833
    %1030 = vmatpush1.msra.mxu0 %v832
    %1031 = vmatprep.subr.mxu0 %v839
    %1032 = vmatpush1.msra.mxu0 %v838
    %1033 = vmatprep.subr.mxu0 %v845
    %1034 = vmatpush1.msra.mxu0 %v844
    %1035 = vmatprep.subr.mxu0 %v851
    %1036 = vmatpush1.msra.mxu0 %v850
    %1037 = vmatprep.subr.mxu0 %v857
    %1038 = vmatpush1.msra.mxu0 %v856
    %1039 = vmatprep.subr.mxu0 %v863
    %1040 = vmatpush1.msra.mxu0 %v862
    %1041 = vmatprep.subr.mxu0 %v869
    %1042 = vmatpush1.msra.mxu0 %v868
    %1043 = vmatprep.subr.mxu0 %v875
    %1044 = vmatpush1.msra.mxu0 %v874
    %1045 = vmatprep.subr.mxu0 %v881
    %1046 = vmatpush1.msra.mxu0 %v880
    %1047 = vmatprep.subr.mxu0 %v887
    %1048 = vmatpush1.msra.mxu0 %v886
    %1049 = vmatprep.subr.mxu0 %v893
    %1050 = vmatpush1.msra.mxu0 %v892
    %1051 = vmatprep.subr.mxu0 %v899
    %1052 = vmatpush1.msra.mxu0 %v898
    %1053 = vmatprep.subr.mxu0 %v905
    %1054 = vmatpush1.msra.mxu0 %v904
    %1055 = vmatprep.subr.mxu0 %v911
    %1056 = vmatpush1.msra.mxu0 %v910
    %1057 = vmatprep.subr.mxu0 %v917
    %1058 = vmatpush1.msra.mxu0 %v916
    %1059 = vmatprep.subr.mxu0 %v923
    %1060 = vmatpush1.msra.mxu0 %v922
    %1061 = vmatprep.subr.mxu0 %v929
    %1062 = vmatpush1.msra.mxu0 %v928
    %1063 = vmatprep.subr.mxu0 %v935
    %1064 = vmatpush1.msra.mxu0 %v934
    %1065 = vmatprep.subr.mxu0 %v941
    %1066 = vmatpush1.msra.mxu0 %v940
    %1067 = vmatprep.subr.mxu0 %v947
    %1068 = vmatpush1.msra.mxu0 %v946
    %1069 = vmatprep.subr.mxu0 %v953
    %1070 = vmatpush1.msra.mxu0 %v952
    %1071 = vmatprep.subr.mxu0 %v959
    %1072 = vmatpush1.msra.mxu0 %v958
    %1073 = vmatprep.subr.mxu0 %v965
    %1074 = vmatpush1.msra.mxu0 %v964
    %1075 = vmatprep.subr.mxu0 %v971
    %1076 = vmatpush1.msra.mxu0 %v970
    %1077 = vmatprep.subr.mxu0 %v977
    %1078 = vmatpush1.msra.mxu0 %v976
    %1079 = vmatprep.subr.mxu0 %v983
    %1080 = vmatpush1.msra.mxu0 %v982
    %1081 = vmatprep.subr.mxu0 %v989
    %1082 = vmatpush1.msra.mxu0 %v988
    %1083 = vmatprep.subr.mxu0 %v995
    %1084 = vmatpush1.msra.mxu0 %v994
    %1085 = vmatprep.subr.mxu0 %v1001
    %1086 = vmatpush1.msra.mxu0 %v1000
    %1087 = vmatprep.subr.mxu0 %v1007
    %1088 = vmatpush1.msra.mxu0 %v1006
    %1089 = vmatprep.subr.mxu0 %v1013
    %1090 = vmatpush1.msra.mxu0 %v1012
    %1091 = vmatprep.mubr.f32.mxu0 %v1024
    %1092 = vmatmul.mubr.f32.gmra.mrb[0].mxu0 %v1023
    %v1093 = vpop.f32.mrb[0].mxu0
    %v1094 = vadd.f32 0.0, %v1093
    %v1095 = vpop.f32.mrb[0].mxu0
    %v1096 = vadd.f32 0.0, %v1095
    %1097 = vdwg.mxu0
    %1098 = vmatprep.subr.mxu0 %v829
    %1099 = vmatpush1.msra.mxu0 %v828
    %1100 = vmatprep.subr.mxu0 %v835
    %1101 = vmatpush1.msra.mxu0 %v834
    %1102 = vmatprep.subr.mxu0 %v841
    %1103 = vmatpush1.msra.mxu0 %v840
    %1104 = vmatprep.subr.mxu0 %v847
    %1105 = vmatpush1.msra.mxu0 %v846
    %1106 = vmatprep.subr.mxu0 %v853
    %1107 = vmatpush1.msra.mxu0 %v852
    %1108 = vmatprep.subr.mxu0 %v859
    %1109 = vmatpush1.msra.mxu0 %v858
    %1110 = vmatprep.subr.mxu0 %v865
    %1111 = vmatpush1.msra.mxu0 %v864
    %1112 = vmatprep.subr.mxu0 %v871
    %1113 = vmatpush1.msra.mxu0 %v870
    %1114 = vmatprep.subr.mxu0 %v877
    %1115 = vmatpush1.msra.mxu0 %v876
    %1116 = vmatprep.subr.mxu0 %v883
    %1117 = vmatpush1.msra.mxu0 %v882
    %1118 = vmatprep.subr.mxu0 %v889
    %1119 = vmatpush1.msra.mxu0 %v888
    %1120 = vmatprep.subr.mxu0 %v895
    %1121 = vmatpush1.msra.mxu0 %v894
    %1122 = vmatprep.subr.mxu0 %v901
    %1123 = vmatpush1.msra.mxu0 %v900
    %1124 = vmatprep.subr.mxu0 %v907
    %1125 = vmatpush1.msra.mxu0 %v906
    %1126 = vmatprep.subr.mxu0 %v913
    %1127 = vmatpush1.msra.mxu0 %v912
    %1128 = vmatprep.subr.mxu0 %v919
    %1129 = vmatpush1.msra.mxu0 %v918
    %1130 = vmatprep.subr.mxu0 %v925
    %1131 = vmatpush1.msra.mxu0 %v924
    %1132 = vmatprep.subr.mxu0 %v931
    %1133 = vmatpush1.msra.mxu0 %v930
    %1134 = vmatprep.subr.mxu0 %v937
    %1135 = vmatpush1.msra.mxu0 %v936
    %1136 = vmatprep.subr.mxu0 %v943
    %1137 = vmatpush1.msra.mxu0 %v942
    %1138 = vmatprep.subr.mxu0 %v949
    %1139 = vmatpush1.msra.mxu0 %v948
    %1140 = vmatprep.subr.mxu0 %v955
    %1141 = vmatpush1.msra.mxu0 %v954
    %1142 = vmatprep.subr.mxu0 %v961
    %1143 = vmatpush1.msra.mxu0 %v960
    %1144 = vmatprep.subr.mxu0 %v967
    %1145 = vmatpush1.msra.mxu0 %v966
    %1146 = vmatprep.subr.mxu0 %v973
    %1147 = vmatpush1.msra.mxu0 %v972
    %1148 = vmatprep.subr.mxu0 %v979
    %1149 = vmatpush1.msra.mxu0 %v978
    %1150 = vmatprep.subr.mxu0 %v985
    %1151 = vmatpush1.msra.mxu0 %v984
    %1152 = vmatprep.subr.mxu0 %v991
    %1153 = vmatpush1.msra.mxu0 %v990
    %1154 = vmatprep.subr.mxu0 %v997
    %1155 = vmatpush1.msra.mxu0 %v996
    %1156 = vmatprep.subr.mxu0 %v1003
    %1157 = vmatpush1.msra.mxu0 %v1002
    %1158 = vmatprep.subr.mxu0 %v1009
    %1159 = vmatpush1.msra.mxu0 %v1008
    %1160 = vmatprep.subr.mxu0 %v1015
    %1161 = vmatpush1.msra.mxu0 %v1014
    %1162 = vmatprep.mubr.f32.mxu0 %v1024
    %1163 = vmatmul.mubr.f32.gmra.mrb[0].mxu0 %v1023
    %v1164 = vpop.f32.mrb[0].mxu0
    %v1165 = vadd.f32 0.0, %v1164
    %v1166 = vpop.f32.mrb[0].mxu0
    %v1167 = vadd.f32 0.0, %v1166
    %1168 = vdwg.mxu0
    %1169 = vmatprep.subr.mxu0 %v831
    %1170 = vmatpush1.msra.mxu0 %v830
    %1171 = vmatprep.subr.mxu0 %v837
    %1172 = vmatpush1.msra.mxu0 %v836
    %1173 = vmatprep.subr.mxu0 %v843
    %1174 = vmatpush1.msra.mxu0 %v842
    %1175 = vmatprep.subr.mxu0 %v849
    %1176 = vmatpush1.msra.mxu0 %v848
    %1177 = vmatprep.subr.mxu0 %v855
    %1178 = vmatpush1.msra.mxu0 %v854
    %1179 = vmatprep.subr.mxu0 %v861
    %1180 = vmatpush1.msra.mxu0 %v860
    %1181 = vmatprep.subr.mxu0 %v867
    %1182 = vmatpush1.msra.mxu0 %v866
    %1183 = vmatprep.subr.mxu0 %v873
    %1184 = vmatpush1.msra.mxu0 %v872
    %1185 = vmatprep.subr.mxu0 %v879
    %1186 = vmatpush1.msra.mxu0 %v878
    %1187 = vmatprep.subr.mxu0 %v885
    %1188 = vmatpush1.msra.mxu0 %v884
    %1189 = vmatprep.subr.mxu0 %v891
    %1190 = vmatpush1.msra.mxu0 %v890
    %1191 = vmatprep.subr.mxu0 %v897
    %1192 = vmatpush1.msra.mxu0 %v896
    %1193 = vmatprep.subr.mxu0 %v903
    %1194 = vmatpush1.msra.mxu0 %v902
    %1195 = vmatprep.subr.mxu0 %v909
    %1196 = vmatpush1.msra.mxu0 %v908
    %1197 = vmatprep.subr.mxu0 %v915
    %1198 = vmatpush1.msra.mxu0 %v914
    %1199 = vmatprep.subr.mxu0 %v921
    %1200 = vmatpush1.msra.mxu0 %v920
    %1201 = vmatprep.subr.mxu0 %v927
    %1202 = vmatpush1.msra.mxu0 %v926
    %1203 = vmatprep.subr.mxu0 %v933
    %1204 = vmatpush1.msra.mxu0 %v932
    %1205 = vmatprep.subr.mxu0 %v939
    %1206 = vmatpush1.msra.mxu0 %v938
    %1207 = vmatprep.subr.mxu0 %v945
    %1208 = vmatpush1.msra.mxu0 %v944
    %1209 = vmatprep.subr.mxu0 %v951
    %1210 = vmatpush1.msra.mxu0 %v950
    %1211 = vmatprep.subr.mxu0 %v957
    %1212 = vmatpush1.msra.mxu0 %v956
    %1213 = vmatprep.subr.mxu0 %v963
    %1214 = vmatpush1.msra.mxu0 %v962
    %1215 = vmatprep.subr.mxu0 %v969
    %1216 = vmatpush1.msra.mxu0 %v968
    %1217 = vmatprep.subr.mxu0 %v975
    %1218 = vmatpush1.msra.mxu0 %v974
    %1219 = vmatprep.subr.mxu0 %v981
    %1220 = vmatpush1.msra.mxu0 %v980
    %1221 = vmatprep.subr.mxu0 %v987
    %1222 = vmatpush1.msra.mxu0 %v986
    %1223 = vmatprep.subr.mxu0 %v993
    %1224 = vmatpush1.msra.mxu0 %v992
    %1225 = vmatprep.subr.mxu0 %v999
    %1226 = vmatpush1.msra.mxu0 %v998
    %1227 = vmatprep.subr.mxu0 %v1005
    %1228 = vmatpush1.msra.mxu0 %v1004
    %1229 = vmatprep.subr.mxu0 %v1011
    %1230 = vmatpush1.msra.mxu0 %v1010
    %1231 = vmatprep.subr.mxu0 %v1017
    %1232 = vmatpush1.msra.mxu0 %v1016
    %1233 = vmatprep.mubr.f32.mxu0 %v1024
    %1234 = vmatmul.mubr.f32.gmra.mrb[0].mxu0 %v1023
    %v1235 = vpop.f32.mrb[0].mxu0
    %v1236 = vadd.f32 0.0, %v1235
    %v1237 = vpop.f32.mrb[0].mxu0
    %v1238 = vadd.f32 0.0, %v1237
    %1239 = vdwg.mxu0
    %v1252 = vsel %vm1022, %v203, %v197
    %v1253 = vsel %vm1022, %v204, %v198
    %v1254 = vsel %vm1022, %v205, %v199
    %v1255 = vsel %vm1022, %v206, %v200
    %v1256 = vsel %vm1022, %v207, %v201
    %v1257 = vsel %vm1022, %v208, %v202
    %1264 = vmatprep.subr.mxu0 %v251
    %1265 = vmatpush1.msra.mxu0 %v250
    %1266 = vmatprep.subr.mxu0 %v257
    %1267 = vmatpush1.msra.mxu0 %v256
    %1268 = vmatprep.subr.mxu0 %v263
    %1269 = vmatpush1.msra.mxu0 %v262
    %1270 = vmatprep.subr.mxu0 %v269
    %1271 = vmatpush1.msra.mxu0 %v268
    %1272 = vmatprep.subr.mxu0 %v275
    %1273 = vmatpush1.msra.mxu0 %v274
    %1274 = vmatprep.subr.mxu0 %v281
    %1275 = vmatpush1.msra.mxu0 %v280
    %1276 = vmatprep.subr.mxu0 %v287
    %1277 = vmatpush1.msra.mxu0 %v286
    %1278 = vmatprep.subr.mxu0 %v293
    %1279 = vmatpush1.msra.mxu0 %v292
    %1280 = vmatprep.subr.mxu0 %v299
    %1281 = vmatpush1.msra.mxu0 %v298
    %1282 = vmatprep.subr.mxu0 %v305
    %1283 = vmatpush1.msra.mxu0 %v304
    %1284 = vmatprep.subr.mxu0 %v311
    %1285 = vmatpush1.msra.mxu0 %v310
    %1286 = vmatprep.subr.mxu0 %v317
    %1287 = vmatpush1.msra.mxu0 %v316
    %1288 = vmatprep.subr.mxu0 %v323
    %1289 = vmatpush1.msra.mxu0 %v322
    %1290 = vmatprep.subr.mxu0 %v329
    %1291 = vmatpush1.msra.mxu0 %v328
    %1292 = vmatprep.subr.mxu0 %v335
    %1293 = vmatpush1.msra.mxu0 %v334
    %1294 = vmatprep.subr.mxu0 %v341
    %1295 = vmatpush1.msra.mxu0 %v340
    %1296 = vmatprep.subr.mxu0 %v347
    %1297 = vmatpush1.msra.mxu0 %v346
    %1298 = vmatprep.subr.mxu0 %v353
    %1299 = vmatpush1.msra.mxu0 %v352
    %1300 = vmatprep.subr.mxu0 %v359
    %1301 = vmatpush1.msra.mxu0 %v358
    %1302 = vmatprep.subr.mxu0 %v365
    %1303 = vmatpush1.msra.mxu0 %v364
    %1304 = vmatprep.subr.mxu0 %v371
    %1305 = vmatpush1.msra.mxu0 %v370
    %1306 = vmatprep.subr.mxu0 %v377
    %1307 = vmatpush1.msra.mxu0 %v376
    %1308 = vmatprep.subr.mxu0 %v383
    %1309 = vmatpush1.msra.mxu0 %v382
    %1310 = vmatprep.subr.mxu0 %v389
    %1311 = vmatpush1.msra.mxu0 %v388
    %1312 = vmatprep.subr.mxu0 %v395
    %1313 = vmatpush1.msra.mxu0 %v394
    %1314 = vmatprep.subr.mxu0 %v401
    %1315 = vmatpush1.msra.mxu0 %v400
    %1316 = vmatprep.subr.mxu0 %v407
    %1317 = vmatpush1.msra.mxu0 %v406
    %1318 = vmatprep.subr.mxu0 %v413
    %1319 = vmatpush1.msra.mxu0 %v412
    %1320 = vmatprep.subr.mxu0 %v419
    %1321 = vmatpush1.msra.mxu0 %v418
    %1322 = vmatprep.subr.mxu0 %v425
    %1323 = vmatpush1.msra.mxu0 %v424
    %1324 = vmatprep.subr.mxu0 %v431
    %1325 = vmatpush1.msra.mxu0 %v430
    %1326 = vmatprep.subr.mxu0 %v437
    %1327 = vmatpush1.msra.mxu0 %v436
    %1328 = vmatprep.mubr.f32.mxu0 %v1253
    %1329 = vmatmul.mubr.f32.gmra.mrb[0].mxu0 %v1252
    %v1330 = vpop.f32.mrb[0].mxu0
    %v1331 = vadd.f32 %v1094, %v1330
    %v1332 = vpop.f32.mrb[0].mxu0
    %v1333 = vadd.f32 %v1096, %v1332
    %1334 = vdwg.mxu0
    %1335 = vmatprep.subr.mxu0 %v443
    %1336 = vmatpush1.msra.mxu0 %v442
    %1337 = vmatprep.subr.mxu0 %v449
    %1338 = vmatpush1.msra.mxu0 %v448
    %1339 = vmatprep.subr.mxu0 %v455
    %1340 = vmatpush1.msra.mxu0 %v454
    %1341 = vmatprep.subr.mxu0 %v461
    %1342 = vmatpush1.msra.mxu0 %v460
    %1343 = vmatprep.subr.mxu0 %v467
    %1344 = vmatpush1.msra.mxu0 %v466
    %1345 = vmatprep.subr.mxu0 %v473
    %1346 = vmatpush1.msra.mxu0 %v472
    %1347 = vmatprep.subr.mxu0 %v479
    %1348 = vmatpush1.msra.mxu0 %v478
    %1349 = vmatprep.subr.mxu0 %v485
    %1350 = vmatpush1.msra.mxu0 %v484
    %1351 = vmatprep.subr.mxu0 %v491
    %1352 = vmatpush1.msra.mxu0 %v490
    %1353 = vmatprep.subr.mxu0 %v497
    %1354 = vmatpush1.msra.mxu0 %v496
    %1355 = vmatprep.subr.mxu0 %v503
    %1356 = vmatpush1.msra.mxu0 %v502
    %1357 = vmatprep.subr.mxu0 %v509
    %1358 = vmatpush1.msra.mxu0 %v508
    %1359 = vmatprep.subr.mxu0 %v515
    %1360 = vmatpush1.msra.mxu0 %v514
    %1361 = vmatprep.subr.mxu0 %v521
    %1362 = vmatpush1.msra.mxu0 %v520
    %1363 = vmatprep.subr.mxu0 %v527
    %1364 = vmatpush1.msra.mxu0 %v526
    %1365 = vmatprep.subr.mxu0 %v533
    %1366 = vmatpush1.msra.mxu0 %v532
    %1367 = vmatprep.subr.mxu0 %v539
    %1368 = vmatpush1.msra.mxu0 %v538
    %1369 = vmatprep.subr.mxu0 %v545
    %1370 = vmatpush1.msra.mxu0 %v544
    %1371 = vmatprep.subr.mxu0 %v551
    %1372 = vmatpush1.msra.mxu0 %v550
    %1373 = vmatprep.subr.mxu0 %v557
    %1374 = vmatpush1.msra.mxu0 %v556
    %1375 = vmatprep.subr.mxu0 %v563
    %1376 = vmatpush1.msra.mxu0 %v562
    %1377 = vmatprep.subr.mxu0 %v569
    %1378 = vmatpush1.msra.mxu0 %v568
    %1379 = vmatprep.subr.mxu0 %v575
    %1380 = vmatpush1.msra.mxu0 %v574
    %1381 = vmatprep.subr.mxu0 %v581
    %1382 = vmatpush1.msra.mxu0 %v580
    %1383 = vmatprep.subr.mxu0 %v587
    %1384 = vmatpush1.msra.mxu0 %v586
    %1385 = vmatprep.subr.mxu0 %v593
    %1386 = vmatpush1.msra.mxu0 %v592
    %1387 = vmatprep.subr.mxu0 %v599
    %1388 = vmatpush1.msra.mxu0 %v598
    %1389 = vmatprep.subr.mxu0 %v605
    %1390 = vmatpush1.msra.mxu0 %v604
    %1391 = vmatprep.subr.mxu0 %v611
    %1392 = vmatpush1.msra.mxu0 %v610
    %1393 = vmatprep.subr.mxu0 %v617
    %1394 = vmatpush1.msra.mxu0 %v616
    %1395 = vmatprep.subr.mxu0 %v623
    %1396 = vmatpush1.msra.mxu0 %v622
    %1397 = vmatprep.subr.mxu0 %v629
    %1398 = vmatpush1.msra.mxu0 %v628
    %1399 = vmatprep.mubr.f32.mxu0 %v1255
    %1400 = vmatmul.mubr.f32.gmra.mrb[0].mxu0 %v1254
    %v1401 = vpop.f32.mrb[0].mxu0
    %v1402 = vadd.f32 %v1331, %v1401
    %v1403 = vpop.f32.mrb[0].mxu0
    %v1404 = vadd.f32 %v1333, %v1403
    %1405 = vdwg.mxu0
    %1406 = vmatprep.subr.mxu0 %v635
    %1407 = vmatpush1.msra.mxu0 %v634
    %1408 = vmatprep.subr.mxu0 %v641
    %1409 = vmatpush1.msra.mxu0 %v640
    %1410 = vmatprep.subr.mxu0 %v647
    %1411 = vmatpush1.msra.mxu0 %v646
    %1412 = vmatprep.subr.mxu0 %v653
    %1413 = vmatpush1.msra.mxu0 %v652
    %1414 = vmatprep.subr.mxu0 %v659
    %1415 = vmatpush1.msra.mxu0 %v658
    %1416 = vmatprep.subr.mxu0 %v665
    %1417 = vmatpush1.msra.mxu0 %v664
    %1418 = vmatprep.subr.mxu0 %v671
    %1419 = vmatpush1.msra.mxu0 %v670
    %1420 = vmatprep.subr.mxu0 %v677
    %1421 = vmatpush1.msra.mxu0 %v676
    %1422 = vmatprep.subr.mxu0 %v683
    %1423 = vmatpush1.msra.mxu0 %v682
    %1424 = vmatprep.subr.mxu0 %v689
    %1425 = vmatpush1.msra.mxu0 %v688
    %1426 = vmatprep.subr.mxu0 %v695
    %1427 = vmatpush1.msra.mxu0 %v694
    %1428 = vmatprep.subr.mxu0 %v701
    %1429 = vmatpush1.msra.mxu0 %v700
    %1430 = vmatprep.subr.mxu0 %v707
    %1431 = vmatpush1.msra.mxu0 %v706
    %1432 = vmatprep.subr.mxu0 %v713
    %1433 = vmatpush1.msra.mxu0 %v712
    %1434 = vmatprep.subr.mxu0 %v719
    %1435 = vmatpush1.msra.mxu0 %v718
    %1436 = vmatprep.subr.mxu0 %v725
    %1437 = vmatpush1.msra.mxu0 %v724
    %1438 = vmatprep.subr.mxu0 %v731
    %1439 = vmatpush1.msra.mxu0 %v730
    %1440 = vmatprep.subr.mxu0 %v737
    %1441 = vmatpush1.msra.mxu0 %v736
    %1442 = vmatprep.subr.mxu0 %v743
    %1443 = vmatpush1.msra.mxu0 %v742
    %1444 = vmatprep.subr.mxu0 %v749
    %1445 = vmatpush1.msra.mxu0 %v748
    %1446 = vmatprep.subr.mxu0 %v755
    %1447 = vmatpush1.msra.mxu0 %v754
    %1448 = vmatprep.subr.mxu0 %v761
    %1449 = vmatpush1.msra.mxu0 %v760
    %1450 = vmatprep.subr.mxu0 %v767
    %1451 = vmatpush1.msra.mxu0 %v766
    %1452 = vmatprep.subr.mxu0 %v773
    %1453 = vmatpush1.msra.mxu0 %v772
    %1454 = vmatprep.subr.mxu0 %v779
    %1455 = vmatpush1.msra.mxu0 %v778
    %1456 = vmatprep.subr.mxu0 %v785
    %1457 = vmatpush1.msra.mxu0 %v784
    %1458 = vmatprep.subr.mxu0 %v791
    %1459 = vmatpush1.msra.mxu0 %v790
    %1460 = vmatprep.subr.mxu0 %v797
    %1461 = vmatpush1.msra.mxu0 %v796
    %1462 = vmatprep.subr.mxu0 %v803
    %1463 = vmatpush1.msra.mxu0 %v802
    %1464 = vmatprep.subr.mxu0 %v809
    %1465 = vmatpush1.msra.mxu0 %v808
    %1466 = vmatprep.subr.mxu0 %v815
    %1467 = vmatpush1.msra.mxu0 %v814
    %1468 = vmatprep.subr.mxu0 %v821
    %1469 = vmatpush1.msra.mxu0 %v820
    %1470 = vmatprep.mubr.f32.mxu0 %v1257
    %1471 = vmatmul.mubr.f32.gmra.mrb[0].mxu0 %v1256
    %v1472 = vpop.f32.mrb[0].mxu0
    %v1473 = vadd.f32 %v1402, %v1472
    %v1474 = vpop.f32.mrb[0].mxu0
    %v1475 = vadd.f32 %v1404, %v1474
    %1476 = vdwg.mxu0
    %1477 = vmatprep.subr.mxu0 %v253
    %1478 = vmatpush1.msra.mxu0 %v252
    %1479 = vmatprep.subr.mxu0 %v259
    %1480 = vmatpush1.msra.mxu0 %v258
    %1481 = vmatprep.subr.mxu0 %v265
    %1482 = vmatpush1.msra.mxu0 %v264
    %1483 = vmatprep.subr.mxu0 %v271
    %1484 = vmatpush1.msra.mxu0 %v270
    %1485 = vmatprep.subr.mxu0 %v277
    %1486 = vmatpush1.msra.mxu0 %v276
    %1487 = vmatprep.subr.mxu0 %v283
    %1488 = vmatpush1.msra.mxu0 %v282
    %1489 = vmatprep.subr.mxu0 %v289
    %1490 = vmatpush1.msra.mxu0 %v288
    %1491 = vmatprep.subr.mxu0 %v295
    %1492 = vmatpush1.msra.mxu0 %v294
    %1493 = vmatprep.subr.mxu0 %v301
    %1494 = vmatpush1.msra.mxu0 %v300
    %1495 = vmatprep.subr.mxu0 %v307
    %1496 = vmatpush1.msra.mxu0 %v306
    %1497 = vmatprep.subr.mxu0 %v313
    %1498 = vmatpush1.msra.mxu0 %v312
    %1499 = vmatprep.subr.mxu0 %v319
    %1500 = vmatpush1.msra.mxu0 %v318
    %1501 = vmatprep.subr.mxu0 %v325
    %1502 = vmatpush1.msra.mxu0 %v324
    %1503 = vmatprep.subr.mxu0 %v331
    %1504 = vmatpush1.msra.mxu0 %v330
    %1505 = vmatprep.subr.mxu0 %v337
    %1506 = vmatpush1.msra.mxu0 %v336
    %1507 = vmatprep.subr.mxu0 %v343
    %1508 = vmatpush1.msra.mxu0 %v342
    %1509 = vmatprep.subr.mxu0 %v349
    %1510 = vmatpush1.msra.mxu0 %v348
    %1511 = vmatprep.subr.mxu0 %v355
    %1512 = vmatpush1.msra.mxu0 %v354
    %1513 = vmatprep.subr.mxu0 %v361
    %1514 = vmatpush1.msra.mxu0 %v360
    %1515 = vmatprep.subr.mxu0 %v367
    %1516 = vmatpush1.msra.mxu0 %v366
    %1517 = vmatprep.subr.mxu0 %v373
    %1518 = vmatpush1.msra.mxu0 %v372
    %1519 = vmatprep.subr.mxu0 %v379
    %1520 = vmatpush1.msra.mxu0 %v378
    %1521 = vmatprep.subr.mxu0 %v385
    %1522 = vmatpush1.msra.mxu0 %v384
    %1523 = vmatprep.subr.mxu0 %v391
    %1524 = vmatpush1.msra.mxu0 %v390
    %1525 = vmatprep.subr.mxu0 %v397
    %1526 = vmatpush1.msra.mxu0 %v396
    %1527 = vmatprep.subr.mxu0 %v403
    %1528 = vmatpush1.msra.mxu0 %v402
    %1529 = vmatprep.subr.mxu0 %v409
    %1530 = vmatpush1.msra.mxu0 %v408
    %1531 = vmatprep.subr.mxu0 %v415
    %1532 = vmatpush1.msra.mxu0 %v414
    %1533 = vmatprep.subr.mxu0 %v421
    %1534 = vmatpush1.msra.mxu0 %v420
    %1535 = vmatprep.subr.mxu0 %v427
    %1536 = vmatpush1.msra.mxu0 %v426
    %1537 = vmatprep.subr.mxu0 %v433
    %1538 = vmatpush1.msra.mxu0 %v432
    %1539 = vmatprep.subr.mxu0 %v439
    %1540 = vmatpush1.msra.mxu0 %v438
    %1541 = vmatprep.mubr.f32.mxu0 %v1253
    %1542 = vmatmul.mubr.f32.gmra.mrb[0].mxu0 %v1252
    %v1543 = vpop.f32.mrb[0].mxu0
    %v1544 = vadd.f32 %v1165, %v1543
    %v1545 = vpop.f32.mrb[0].mxu0
    %v1546 = vadd.f32 %v1167, %v1545
    %1547 = vdwg.mxu0
    %1548 = vmatprep.subr.mxu0 %v445
    %1549 = vmatpush1.msra.mxu0 %v444
    %1550 = vmatprep.subr.mxu0 %v451
    %1551 = vmatpush1.msra.mxu0 %v450
    %1552 = vmatprep.subr.mxu0 %v457
    %1553 = vmatpush1.msra.mxu0 %v456
    %1554 = vmatprep.subr.mxu0 %v463
    %1555 = vmatpush1.msra.mxu0 %v462
    %1556 = vmatprep.subr.mxu0 %v469
    %1557 = vmatpush1.msra.mxu0 %v468
    %1558 = vmatprep.subr.mxu0 %v475
    %1559 = vmatpush1.msra.mxu0 %v474
    %1560 = vmatprep.subr.mxu0 %v481
    %1561 = vmatpush1.msra.mxu0 %v480
    %1562 = vmatprep.subr.mxu0 %v487
    %1563 = vmatpush1.msra.mxu0 %v486
    %1564 = vmatprep.subr.mxu0 %v493
    %1565 = vmatpush1.msra.mxu0 %v492
    %1566 = vmatprep.subr.mxu0 %v499
    %1567 = vmatpush1.msra.mxu0 %v498
    %1568 = vmatprep.subr.mxu0 %v505
    %1569 = vmatpush1.msra.mxu0 %v504
    %1570 = vmatprep.subr.mxu0 %v511
    %1571 = vmatpush1.msra.mxu0 %v510
    %1572 = vmatprep.subr.mxu0 %v517
    %1573 = vmatpush1.msra.mxu0 %v516
    %1574 = vmatprep.subr.mxu0 %v523
    %1575 = vmatpush1.msra.mxu0 %v522
    %1576 = vmatprep.subr.mxu0 %v529
    %1577 = vmatpush1.msra.mxu0 %v528
    %1578 = vmatprep.subr.mxu0 %v535
    %1579 = vmatpush1.msra.mxu0 %v534
    %1580 = vmatprep.subr.mxu0 %v541
    %1581 = vmatpush1.msra.mxu0 %v540
    %1582 = vmatprep.subr.mxu0 %v547
    %1583 = vmatpush1.msra.mxu0 %v546
    %1584 = vmatprep.subr.mxu0 %v553
    %1585 = vmatpush1.msra.mxu0 %v552
    %1586 = vmatprep.subr.mxu0 %v559
    %1587 = vmatpush1.msra.mxu0 %v558
    %1588 = vmatprep.subr.mxu0 %v565
    %1589 = vmatpush1.msra.mxu0 %v564
    %1590 = vmatprep.subr.mxu0 %v571
    %1591 = vmatpush1.msra.mxu0 %v570
    %1592 = vmatprep.subr.mxu0 %v577
    %1593 = vmatpush1.msra.mxu0 %v576
    %1594 = vmatprep.subr.mxu0 %v583
    %1595 = vmatpush1.msra.mxu0 %v582
    %1596 = vmatprep.subr.mxu0 %v589
    %1597 = vmatpush1.msra.mxu0 %v588
    %1598 = vmatprep.subr.mxu0 %v595
    %1599 = vmatpush1.msra.mxu0 %v594
    %1600 = vmatprep.subr.mxu0 %v601
    %1601 = vmatpush1.msra.mxu0 %v600
    %1602 = vmatprep.subr.mxu0 %v607
    %1603 = vmatpush1.msra.mxu0 %v606
    %1604 = vmatprep.subr.mxu0 %v613
    %1605 = vmatpush1.msra.mxu0 %v612
    %1606 = vmatprep.subr.mxu0 %v619
    %1607 = vmatpush1.msra.mxu0 %v618
    %1608 = vmatprep.subr.mxu0 %v625
    %1609 = vmatpush1.msra.mxu0 %v624
    %1610 = vmatprep.subr.mxu0 %v631
    %1611 = vmatpush1.msra.mxu0 %v630
    %1612 = vmatprep.mubr.f32.mxu0 %v1255
    %1613 = vmatmul.mubr.f32.gmra.mrb[0].mxu0 %v1254
    %v1614 = vpop.f32.mrb[0].mxu0
    %v1615 = vadd.f32 %v1544, %v1614
    %v1616 = vpop.f32.mrb[0].mxu0
    %v1617 = vadd.f32 %v1546, %v1616
    %1618 = vdwg.mxu0
    %1619 = vmatprep.subr.mxu0 %v637
    %1620 = vmatpush1.msra.mxu0 %v636
    %1621 = vmatprep.subr.mxu0 %v643
    %1622 = vmatpush1.msra.mxu0 %v642
    %1623 = vmatprep.subr.mxu0 %v649
    %1624 = vmatpush1.msra.mxu0 %v648
    %1625 = vmatprep.subr.mxu0 %v655
    %1626 = vmatpush1.msra.mxu0 %v654
    %1627 = vmatprep.subr.mxu0 %v661
    %1628 = vmatpush1.msra.mxu0 %v660
    %1629 = vmatprep.subr.mxu0 %v667
    %1630 = vmatpush1.msra.mxu0 %v666
    %1631 = vmatprep.subr.mxu0 %v673
    %1632 = vmatpush1.msra.mxu0 %v672
    %1633 = vmatprep.subr.mxu0 %v679
    %1634 = vmatpush1.msra.mxu0 %v678
    %1635 = vmatprep.subr.mxu0 %v685
    %1636 = vmatpush1.msra.mxu0 %v684
    %1637 = vmatprep.subr.mxu0 %v691
    %1638 = vmatpush1.msra.mxu0 %v690
    %1639 = vmatprep.subr.mxu0 %v697
    %1640 = vmatpush1.msra.mxu0 %v696
    %1641 = vmatprep.subr.mxu0 %v703
    %1642 = vmatpush1.msra.mxu0 %v702
    %1643 = vmatprep.subr.mxu0 %v709
    %1644 = vmatpush1.msra.mxu0 %v708
    %1645 = vmatprep.subr.mxu0 %v715
    %1646 = vmatpush1.msra.mxu0 %v714
    %1647 = vmatprep.subr.mxu0 %v721
    %1648 = vmatpush1.msra.mxu0 %v720
    %1649 = vmatprep.subr.mxu0 %v727
    %1650 = vmatpush1.msra.mxu0 %v726
    %1651 = vmatprep.subr.mxu0 %v733
    %1652 = vmatpush1.msra.mxu0 %v732
    %1653 = vmatprep.subr.mxu0 %v739
    %1654 = vmatpush1.msra.mxu0 %v738
    %1655 = vmatprep.subr.mxu0 %v745
    %1656 = vmatpush1.msra.mxu0 %v744
    %1657 = vmatprep.subr.mxu0 %v751
    %1658 = vmatpush1.msra.mxu0 %v750
    %1659 = vmatprep.subr.mxu0 %v757
    %1660 = vmatpush1.msra.mxu0 %v756
    %1661 = vmatprep.subr.mxu0 %v763
    %1662 = vmatpush1.msra.mxu0 %v762
    %1663 = vmatprep.subr.mxu0 %v769
    %1664 = vmatpush1.msra.mxu0 %v768
    %1665 = vmatprep.subr.mxu0 %v775
    %1666 = vmatpush1.msra.mxu0 %v774
    %1667 = vmatprep.subr.mxu0 %v781
    %1668 = vmatpush1.msra.mxu0 %v780
    %1669 = vmatprep.subr.mxu0 %v787
    %1670 = vmatpush1.msra.mxu0 %v786
    %1671 = vmatprep.subr.mxu0 %v793
    %1672 = vmatpush1.msra.mxu0 %v792
    %1673 = vmatprep.subr.mxu0 %v799
    %1674 = vmatpush1.msra.mxu0 %v798
    %1675 = vmatprep.subr.mxu0 %v805
    %1676 = vmatpush1.msra.mxu0 %v804
    %1677 = vmatprep.subr.mxu0 %v811
    %1678 = vmatpush1.msra.mxu0 %v810
    %1679 = vmatprep.subr.mxu0 %v817
    %1680 = vmatpush1.msra.mxu0 %v816
    %1681 = vmatprep.subr.mxu0 %v823
    %1682 = vmatpush1.msra.mxu0 %v822
    %1683 = vmatprep.mubr.f32.mxu0 %v1257
    %1684 = vmatmul.mubr.f32.gmra.mrb[0].mxu0 %v1256
    %v1685 = vpop.f32.mrb[0].mxu0
    %v1686 = vadd.f32 %v1615, %v1685
    %v1687 = vpop.f32.mrb[0].mxu0
    %v1688 = vadd.f32 %v1617, %v1687
    %1689 = vdwg.mxu0
    %1690 = vmatprep.subr.mxu0 %v255
    %1691 = vmatpush1.msra.mxu0 %v254
    %1692 = vmatprep.subr.mxu0 %v261
    %1693 = vmatpush1.msra.mxu0 %v260
    %1694 = vmatprep.subr.mxu0 %v267
    %1695 = vmatpush1.msra.mxu0 %v266
    %1696 = vmatprep.subr.mxu0 %v273
    %1697 = vmatpush1.msra.mxu0 %v272
    %1698 = vmatprep.subr.mxu0 %v279
    %1699 = vmatpush1.msra.mxu0 %v278
    %1700 = vmatprep.subr.mxu0 %v285
    %1701 = vmatpush1.msra.mxu0 %v284
    %1702 = vmatprep.subr.mxu0 %v291
    %1703 = vmatpush1.msra.mxu0 %v290
    %1704 = vmatprep.subr.mxu0 %v297
    %1705 = vmatpush1.msra.mxu0 %v296
    %1706 = vmatprep.subr.mxu0 %v303
    %1707 = vmatpush1.msra.mxu0 %v302
    %1708 = vmatprep.subr.mxu0 %v309
    %1709 = vmatpush1.msra.mxu0 %v308
    %1710 = vmatprep.subr.mxu0 %v315
    %1711 = vmatpush1.msra.mxu0 %v314
    %1712 = vmatprep.subr.mxu0 %v321
    %1713 = vmatpush1.msra.mxu0 %v320
    %1714 = vmatprep.subr.mxu0 %v327
    %1715 = vmatpush1.msra.mxu0 %v326
    %1716 = vmatprep.subr.mxu0 %v333
    %1717 = vmatpush1.msra.mxu0 %v332
    %1718 = vmatprep.subr.mxu0 %v339
    %1719 = vmatpush1.msra.mxu0 %v338
    %1720 = vmatprep.subr.mxu0 %v345
    %1721 = vmatpush1.msra.mxu0 %v344
    %1722 = vmatprep.subr.mxu0 %v351
    %1723 = vmatpush1.msra.mxu0 %v350
    %1724 = vmatprep.subr.mxu0 %v357
    %1725 = vmatpush1.msra.mxu0 %v356
    %1726 = vmatprep.subr.mxu0 %v363
    %1727 = vmatpush1.msra.mxu0 %v362
    %1728 = vmatprep.subr.mxu0 %v369
    %1729 = vmatpush1.msra.mxu0 %v368
    %1730 = vmatprep.subr.mxu0 %v375
    %1731 = vmatpush1.msra.mxu0 %v374
    %1732 = vmatprep.subr.mxu0 %v381
    %1733 = vmatpush1.msra.mxu0 %v380
    %1734 = vmatprep.subr.mxu0 %v387
    %1735 = vmatpush1.msra.mxu0 %v386
    %1736 = vmatprep.subr.mxu0 %v393
    %1737 = vmatpush1.msra.mxu0 %v392
    %1738 = vmatprep.subr.mxu0 %v399
    %1739 = vmatpush1.msra.mxu0 %v398
    %1740 = vmatprep.subr.mxu0 %v405
    %1741 = vmatpush1.msra.mxu0 %v404
    %1742 = vmatprep.subr.mxu0 %v411
    %1743 = vmatpush1.msra.mxu0 %v410
    %1744 = vmatprep.subr.mxu0 %v417
    %1745 = vmatpush1.msra.mxu0 %v416
    %1746 = vmatprep.subr.mxu0 %v423
    %1747 = vmatpush1.msra.mxu0 %v422
    %1748 = vmatprep.subr.mxu0 %v429
    %1749 = vmatpush1.msra.mxu0 %v428
    %1750 = vmatprep.subr.mxu0 %v435
    %1751 = vmatpush1.msra.mxu0 %v434
    %1752 = vmatprep.subr.mxu0 %v441
    %1753 = vmatpush1.msra.mxu0 %v440
    %1754 = vmatprep.mubr.f32.mxu0 %v1253
    %1755 = vmatmul.mubr.f32.gmra.mrb[0].mxu0 %v1252
    %v1756 = vpop.f32.mrb[0].mxu0
    %v1757 = vadd.f32 %v1236, %v1756
    %v1758 = vpop.f32.mrb[0].mxu0
    %v1759 = vadd.f32 %v1238, %v1758
    %1760 = vdwg.mxu0
    %1761 = vmatprep.subr.mxu0 %v447
    %1762 = vmatpush1.msra.mxu0 %v446
    %1763 = vmatprep.subr.mxu0 %v453
    %1764 = vmatpush1.msra.mxu0 %v452
    %1765 = vmatprep.subr.mxu0 %v459
    %1766 = vmatpush1.msra.mxu0 %v458
    %1767 = vmatprep.subr.mxu0 %v465
    %1768 = vmatpush1.msra.mxu0 %v464
    %1769 = vmatprep.subr.mxu0 %v471
    %1770 = vmatpush1.msra.mxu0 %v470
    %1771 = vmatprep.subr.mxu0 %v477
    %1772 = vmatpush1.msra.mxu0 %v476
    %1773 = vmatprep.subr.mxu0 %v483
    %1774 = vmatpush1.msra.mxu0 %v482
    %1775 = vmatprep.subr.mxu0 %v489
    %1776 = vmatpush1.msra.mxu0 %v488
    %1777 = vmatprep.subr.mxu0 %v495
    %1778 = vmatpush1.msra.mxu0 %v494
    %1779 = vmatprep.subr.mxu0 %v501
    %1780 = vmatpush1.msra.mxu0 %v500
    %1781 = vmatprep.subr.mxu0 %v507
    %1782 = vmatpush1.msra.mxu0 %v506
    %1783 = vmatprep.subr.mxu0 %v513
    %1784 = vmatpush1.msra.mxu0 %v512
    %1785 = vmatprep.subr.mxu0 %v519
    %1786 = vmatpush1.msra.mxu0 %v518
    %1787 = vmatprep.subr.mxu0 %v525
    %1788 = vmatpush1.msra.mxu0 %v524
    %1789 = vmatprep.subr.mxu0 %v531
    %1790 = vmatpush1.msra.mxu0 %v530
    %1791 = vmatprep.subr.mxu0 %v537
    %1792 = vmatpush1.msra.mxu0 %v536
    %1793 = vmatprep.subr.mxu0 %v543
    %1794 = vmatpush1.msra.mxu0 %v542
    %1795 = vmatprep.subr.mxu0 %v549
    %1796 = vmatpush1.msra.mxu0 %v548
    %1797 = vmatprep.subr.mxu0 %v555
    %1798 = vmatpush1.msra.mxu0 %v554
    %1799 = vmatprep.subr.mxu0 %v561
    %1800 = vmatpush1.msra.mxu0 %v560
    %1801 = vmatprep.subr.mxu0 %v567
    %1802 = vmatpush1.msra.mxu0 %v566
    %1803 = vmatprep.subr.mxu0 %v573
    %1804 = vmatpush1.msra.mxu0 %v572
    %1805 = vmatprep.subr.mxu0 %v579
    %1806 = vmatpush1.msra.mxu0 %v578
    %1807 = vmatprep.subr.mxu0 %v585
    %1808 = vmatpush1.msra.mxu0 %v584
    %1809 = vmatprep.subr.mxu0 %v591
    %1810 = vmatpush1.msra.mxu0 %v590
    %1811 = vmatprep.subr.mxu0 %v597
    %1812 = vmatpush1.msra.mxu0 %v596
    %1813 = vmatprep.subr.mxu0 %v603
    %1814 = vmatpush1.msra.mxu0 %v602
    %1815 = vmatprep.subr.mxu0 %v609
    %1816 = vmatpush1.msra.mxu0 %v608
    %1817 = vmatprep.subr.mxu0 %v615
    %1818 = vmatpush1.msra.mxu0 %v614
    %1819 = vmatprep.subr.mxu0 %v621
    %1820 = vmatpush1.msra.mxu0 %v620
    %1821 = vmatprep.subr.mxu0 %v627
    %1822 = vmatpush1.msra.mxu0 %v626
    %1823 = vmatprep.subr.mxu0 %v633
    %1824 = vmatpush1.msra.mxu0 %v632
    %1825 = vmatprep.mubr.f32.mxu0 %v1255
    %1826 = vmatmul.mubr.f32.gmra.mrb[0].mxu0 %v1254
    %v1827 = vpop.f32.mrb[0].mxu0
    %v1828 = vadd.f32 %v1757, %v1827
    %v1829 = vpop.f32.mrb[0].mxu0
    %v1830 = vadd.f32 %v1759, %v1829
    %1831 = vdwg.mxu0
    %1832 = vmatprep.subr.mxu0 %v639
    %1833 = vmatpush1.msra.mxu0 %v638
    %1834 = vmatprep.subr.mxu0 %v645
    %1835 = vmatpush1.msra.mxu0 %v644
    %1836 = vmatprep.subr.mxu0 %v651
    %1837 = vmatpush1.msra.mxu0 %v650
    %1838 = vmatprep.subr.mxu0 %v657
    %1839 = vmatpush1.msra.mxu0 %v656
    %1840 = vmatprep.subr.mxu0 %v663
    %1841 = vmatpush1.msra.mxu0 %v662
    %1842 = vmatprep.subr.mxu0 %v669
    %1843 = vmatpush1.msra.mxu0 %v668
    %1844 = vmatprep.subr.mxu0 %v675
    %1845 = vmatpush1.msra.mxu0 %v674
    %1846 = vmatprep.subr.mxu0 %v681
    %1847 = vmatpush1.msra.mxu0 %v680
    %1848 = vmatprep.subr.mxu0 %v687
    %1849 = vmatpush1.msra.mxu0 %v686
    %1850 = vmatprep.subr.mxu0 %v693
    %1851 = vmatpush1.msra.mxu0 %v692
    %1852 = vmatprep.subr.mxu0 %v699
    %1853 = vmatpush1.msra.mxu0 %v698
    %1854 = vmatprep.subr.mxu0 %v705
    %1855 = vmatpush1.msra.mxu0 %v704
    %1856 = vmatprep.subr.mxu0 %v711
    %1857 = vmatpush1.msra.mxu0 %v710
    %1858 = vmatprep.subr.mxu0 %v717
    %1859 = vmatpush1.msra.mxu0 %v716
    %1860 = vmatprep.subr.mxu0 %v723
    %1861 = vmatpush1.msra.mxu0 %v722
    %1862 = vmatprep.subr.mxu0 %v729
    %1863 = vmatpush1.msra.mxu0 %v728
    %1864 = vmatprep.subr.mxu0 %v735
    %1865 = vmatpush1.msra.mxu0 %v734
    %1866 = vmatprep.subr.mxu0 %v741
    %1867 = vmatpush1.msra.mxu0 %v740
    %1868 = vmatprep.subr.mxu0 %v747
    %1869 = vmatpush1.msra.mxu0 %v746
    %1870 = vmatprep.subr.mxu0 %v753
    %1871 = vmatpush1.msra.mxu0 %v752
    %1872 = vmatprep.subr.mxu0 %v759
    %1873 = vmatpush1.msra.mxu0 %v758
    %1874 = vmatprep.subr.mxu0 %v765
    %1875 = vmatpush1.msra.mxu0 %v764
    %1876 = vmatprep.subr.mxu0 %v771
    %1877 = vmatpush1.msra.mxu0 %v770
    %1878 = vmatprep.subr.mxu0 %v777
    %1879 = vmatpush1.msra.mxu0 %v776
    %1880 = vmatprep.subr.mxu0 %v783
    %1881 = vmatpush1.msra.mxu0 %v782
    %1882 = vmatprep.subr.mxu0 %v789
    %1883 = vmatpush1.msra.mxu0 %v788
    %1884 = vmatprep.subr.mxu0 %v795
    %1885 = vmatpush1.msra.mxu0 %v794
    %1886 = vmatprep.subr.mxu0 %v801
    %1887 = vmatpush1.msra.mxu0 %v800
    %1888 = vmatprep.subr.mxu0 %v807
    %1889 = vmatpush1.msra.mxu0 %v806
    %1890 = vmatprep.subr.mxu0 %v813
    %1891 = vmatpush1.msra.mxu0 %v812
    %1892 = vmatprep.subr.mxu0 %v819
    %1893 = vmatpush1.msra.mxu0 %v818
    %1894 = vmatprep.subr.mxu0 %v825
    %1895 = vmatpush1.msra.mxu0 %v824
    %1896 = vmatprep.mubr.f32.mxu0 %v1257
    %1897 = vmatmul.mubr.f32.gmra.mrb[0].mxu0 %v1256
    %v1898 = vpop.f32.mrb[0].mxu0
    %v1899 = vadd.f32 %v1828, %v1898
    %v1900 = vpop.f32.mrb[0].mxu0
    %v1901 = vadd.f32 %v1830, %v1900
    %1902 = vdwg.mxu0
    %v1903 = vld [vmem:[#allocation10] sm:$0x3f]
    %v1905 = vlaneseq
    %v1906 = vshrl.u32 %v1905, 7
    %v1907 = vsub.s32 0, %v1906
    %v1908 = vrot.slane %v1903, %v1907
    %v1909 = vlaneseq
    %v1910 = vshrl.u32 %v1909, 7
    %v1911 = vsub.s32 1, %v1910
    %v1912 = vrot.slane %v1903, %v1911
    %v1913 = vlaneseq
    %v1914 = vshrl.u32 %v1913, 7
    %v1915 = vsub.s32 2, %v1914
    %v1916 = vrot.slane %v1903, %v1915
    %v1917 = vlaneseq
    %v1918 = vshrl.u32 %v1917, 7
    %v1919 = vsub.s32 3, %v1918
    %v1920 = vrot.slane %v1903, %v1919
    %v1921 = vlaneseq
    %v1922 = vshrl.u32 %v1921, 7
    %v1923 = vsub.s32 4, %v1922
    %v1924 = vrot.slane %v1903, %v1923
    %v1925 = vlaneseq
    %v1926 = vshrl.u32 %v1925, 7
    %v1927 = vsub.s32 5, %v1926
    %v1928 = vrot.slane %v1903, %v1927
    %v1935 = vadd.f32 %v1473, %v1908
    %v1936 = vadd.f32 %v1475, %v1912
    %v1937 = vadd.f32 %v1686, %v1916
    %v1938 = vadd.f32 %v1688, %v1920
    %v1939 = vadd.f32 %v1899, %v1924
    %v1940 = vadd.f32 %v1901, %v1928
    %v1947 = vcombine.low %v1935, %v1936
    %v1948 = vcombine.low %v1937, %v1938
    %v1950 = vunpack.c.l.s4 1983009808
    %v1951 = vunpack.c.0.s8 %v1950
    %v1952 = vlaneseq
    %v1953 = vshrl.u32 %v1952, 7
    %v1954 = vsub.s32 %v1951, %v1953
    %v1955 = vrot.slane %v1947, %v1954
    %v1957 = vunpack.c.l.s4 1983009808
    %v1958 = vunpack.c.0.s8 %v1957
    %v1959 = vlaneseq
    %v1960 = vshrl.u32 %v1959, 7
    %v1961 = vsub.s32 %v1958, %v1960
    %v1962 = vrot.slane %v1948, %v1961
    %v1963 = vcombine.low %v1955, %v1962
    %v1964 = vcombine.low %v1939, %v1940
    %v1966 = vunpack.c.l.s4 1983009808
    %v1967 = vunpack.c.0.s8 %v1966
    %v1968 = vlaneseq
    %v1969 = vshrl.u32 %v1968, 7
    %v1970 = vsub.s32 %v1967, %v1969
    %v1971 = vrot.slane %v1964, %v1970
    %1974 = vst [vmem:[#allocation11] sm:$0xff] %v1963
    %1975 = vst [vmem:[#allocation11 + $0x8] sm:$0xf] %v1971
    // Predicated region
    $region42: #{tpu_custom_call.1} parent=1 // pred_check
      _
    $region43: #{tpu_custom_call.1} parent=1 // pred_check_branch
      %1977 = sbr.rel (0) target = $region45
    $region44: #{tpu_custom_call.1} parent=1 // pred_region
      %s1979 = ssub.s32 192, 192
      %1980 = vsyncadd [#allocation4], %s1979
      %s1982 = sshll.u32 [#allocation11], 4
      %s1983 = int_to_ptr.vmem [resolvable:$true] %s1982
      %1985 = dma.vmem_to_hbm [thread:$0]  %s1983, 192, %s5, [#allocation4]
    $region45: #{tpu_custom_call.1} parent=1 // pred_fallthru
      _
    // Predicated region
    $region46: #{tpu_custom_call.1} parent=1 // pred_check
      _
    $region47: #{tpu_custom_call.1} parent=1 // pred_check_branch
      %1987 = sbr.rel (0) target = $region49
    $region48: #{tpu_custom_call.1} parent=1 // pred_region
      %1988 = dma.done [#allocation4], 192
    $region49: #{tpu_custom_call.1} parent=1 // pred_fallthru
      _
    %1989 = vsyncpa [#allocation3], 1
    %1990 = vsyncpa [#allocation6], 1
    %1991 = vsyncpa [#allocation9], 1
    %1992 = vsyncpa [#allocation4], 1

</llo_original>
